<compile_context>
chip_gen: v7x
topology: tpu7x:2x2x1
jax: 0.10.0
libtpu: 0.0.40
codegen_flags: <defaults>
</compile_context>

<pallas_src>
import math
import functools

import jax
import jax.numpy as jnp
from jax.experimental import pallas as pl
from jax.experimental.pallas import tpu as pltpu

# ---------------- small synthetic Gemma config ----------------
VOCAB = 256
HIDDEN = 32
INTER = 64
N_LAYERS = 2
N_HEADS = 4
N_KV_HEADS = 2
HEAD_DIM = 16
RMS_EPS = 1e-6
ROPE_THETA = 10000.0
N_REP = N_HEADS // N_KV_HEADS

Q_DIM = N_HEADS * HEAD_DIM           # 64
KV_DIM = N_KV_HEADS * HEAD_DIM       # 32
QKV_DIM = Q_DIM + 2 * KV_DIM         # 128  (lane-dense fused QKV matmul)
GU_DIM = 2 * INTER                   # 128  (lane-dense fused gate|up matmul)
EMB_SCALE = float(HIDDEN) ** 0.5
ATTN_SCALE = 1.0 / math.sqrt(HEAD_DIM)
NEG_INF = float(jnp.finfo(jnp.float32).min)   # match torch.finfo(float32).min


# ---------------- in-kernel helpers (traced into the kernel body) ----------------
def _rms_norm(x, g):
    """Gemma RMSNorm in f32; g already holds (1 + gamma)."""
    var = jnp.mean(x * x, axis=-1, keepdims=True)
    return x * jax.lax.rsqrt(var + RMS_EPS) * g


def _gelu_tanh(x):
    """PyTorch gelu(approximate='tanh') in f32."""
    c = math.sqrt(2.0 / math.pi)
    return 0.5 * x * (1.0 + jnp.tanh(c * (x + 0.044715 * x * x * x)))


def _rope_heads(x, n_heads, cos, sin):
    """Rotary embedding on head-packed x: (M, n_heads*HEAD_DIM).
    cos/sin: (M, HEAD_DIM), shared by all heads.  Uses static lane slices /
    concats only (no reshape/transpose relayout)."""
    half = HEAD_DIM // 2
    out = []
    for h in range(n_heads):
        xh = x[:, h * HEAD_DIM:(h + 1) * HEAD_DIM]
        rot = jnp.concatenate([-xh[:, half:], xh[:, :half]], axis=-1)
        out.append(xh * cos + rot * sin)
    return jnp.concatenate(out, axis=-1)


# ---------------- the single fused kernel ----------------
def _gemma_forward_kernel(
    x0_ref, cos_ref, sin_ref, mask_ref,
    gin_ref, wqkv_ref, wo_ref, gpost_ref, wgu_ref, wd_ref,
    gfin_ref, lmh_ref,
    logits_ref,
    h_ref,
    *, batch, seq,
):
    layer = pl.program_id(0)

    # ---- step 0: initialize residual stream (Gemma embedding scaling) ----
    @pl.when(layer == 0)
    def _():
        h_ref[...] = x0_ref[...] * EMB_SCALE

    x = h_ref[...]                       # (M, H) f32 residual stream (VMEM-resident)
    cos = cos_ref[...]                   # (M, HEAD_DIM)
    sin = sin_ref[...]

    # ---- input RMSNorm fused with the QKV projection (one 128-lane matmul) ----
    xn = _rms_norm(x, gin_ref[...])
    qkv = jnp.dot(xn.astype(jnp.bfloat16), wqkv_ref[...],
                  preferred_element_type=jnp.float32)          # (M, 128)

    q = _rope_heads(qkv[:, :Q_DIM], N_HEADS, cos, sin)                    # (M, 64)
    k = _rope_heads(qkv[:, Q_DIM:Q_DIM + KV_DIM], N_KV_HEADS, cos, sin)   # (M, 32)
    v = qkv[:, Q_DIM + KV_DIM:]                                           # (M, 32)

    # ---- attention: per (batch, query-head), static slices, all inside VMEM ----
    # GQA: query head h uses KV head h // N_REP (no repeat_kv materialization).
    out_rows = []
    for b in range(batch):
        r0 = b * seq
        mask_b = mask_ref[b]                              # (S, S) additive mask
        head_outs = []
        for h in range(N_HEADS):
            g = h // N_REP
            qh = q[r0:r0 + seq, h * HEAD_DIM:(h + 1) * HEAD_DIM]   # (S, D)
            kg = k[r0:r0 + seq, g * HEAD_DIM:(g + 1) * HEAD_DIM]   # (S, D)
            vg = v[r0:r0 + seq, g * HEAD_DIM:(g + 1) * HEAD_DIM]   # (S, D)
            s = jax.lax.dot_general(                               # q @ k^T
                qh.astype(jnp.bfloat16), kg.astype(jnp.bfloat16),
                (((1,), (1,)), ((), ())),
                preferred_element_type=jnp.float32)                # (S, S)
            s = s * ATTN_SCALE + mask_b
            m = jnp.max(s, axis=-1, keepdims=True)
            p = jnp.exp(s - m)
            p = p / jnp.sum(p, axis=-1, keepdims=True)   # exact (parity w/ torch softmax)
            head_outs.append(
                jnp.dot(p.astype(jnp.bfloat16), vg.astype(jnp.bfloat16),
                        preferred_element_type=jnp.float32))        # (S, D)
        out_rows.append(jnp.concatenate(head_outs, axis=-1))        # (S, NH*D)
    attn_out = jnp.concatenate(out_rows, axis=0)                    # (M, NH*D)

    # ---- o-proj + residual ----
    h1 = x + jnp.dot(attn_out.astype(jnp.bfloat16), wo_ref[...],
                     preferred_element_type=jnp.float32)

    # ---- post-attn RMSNorm + GemmaMLP (gate|up fused) + residual ----
    hn = _rms_norm(h1, gpost_ref[...])
    gu = jnp.dot(hn.astype(jnp.bfloat16), wgu_ref[...],
                 preferred_element_type=jnp.float32)                # (M, 2*INTER)
    act = _gelu_tanh(gu[:, :INTER]) * gu[:, INTER:]
    down = jnp.dot(act.astype(jnp.bfloat16), wd_ref[...],
                   preferred_element_type=jnp.float32)
    h2 = h1 + down
    h_ref[...] = h2                                                 # carry to next layer

    # ---- final RMSNorm + lm_head (lane-dense 256-wide output), last layer only ----
    @pl.when(layer == pl.num_programs(0) - 1)
    def _():
        xf = _rms_norm(h2, gfin_ref[...])
        logits_ref[...] = jnp.dot(xf.astype(jnp.bfloat16), lmh_ref[...],
                                  preferred_element_type=jnp.float32)


# ---------------- rotary embedding precompute (plain JAX, weight-independent) ----------------
def rotary_cos_sin(position_ids, dim, base, dtype):
    inv_freq = 1.0 / (base ** (jnp.arange(0, dim, 2, dtype=jnp.float32) / dim))
    freqs = position_ids.astype(jnp.float32)[:, :, None] * inv_freq[None, None, :]
    emb = jnp.concatenate([freqs, freqs], axis=-1)     # (B, S, dim)
    return jnp.cos(emb).astype(dtype), jnp.sin(emb).astype(dtype)


# ---------------- parameter init (deterministic, synthetic, stacked per layer) ----------------
def init_params(key):
    keys = iter(jax.random.split(key, 9 * N_LAYERS + 4))

    def lin(k, out_f, in_f):
        # torch nn.Linear layout (out, in) -> pre-transpose to (in, out), bf16 ONCE
        w = 0.02 * jax.random.normal(k, (out_f, in_f), jnp.float32)
        return w.T.astype(jnp.bfloat16)

    def norm(k):
        # pre-fold GemmaRMSNorm's (1 + gamma) into the stored weight
        return (1.0 + 0.1 * jax.random.normal(k, (HIDDEN,), jnp.float32)).reshape(1, HIDDEN)

    in_ln, wqkv, wo, post_ln, wgu, wd = [], [], [], [], [], []
    for _ in range(N_LAYERS):
        in_ln.append(norm(next(keys)))
        wq = lin(next(keys), N_HEADS * HEAD_DIM, HIDDEN)
        wk = lin(next(keys), N_KV_HEADS * HEAD_DIM, HIDDEN)
        wv = lin(next(keys), N_KV_HEADS * HEAD_DIM, HIDDEN)
        wqkv.append(jnp.concatenate([wq, wk, wv], axis=1))      # (H, 128)
        wo.append(lin(next(keys), HIDDEN, N_HEADS * HEAD_DIM))  # (64, 32)
        post_ln.append(norm(next(keys)))
        wg = lin(next(keys), INTER, HIDDEN)
        wu = lin(next(keys), INTER, HIDDEN)
        wgu.append(jnp.concatenate([wg, wu], axis=1))           # (H, 128) gate|up fused
        wd.append(lin(next(keys), HIDDEN, INTER))                # (64, 32)

    return dict(
        input_ln=jnp.stack(in_ln, 0),      # (L, 1, H) f32, pre-folded (1+g)
        wqkv=jnp.stack(wqkv, 0),           # (L, H, 128) bf16
        wo=jnp.stack(wo, 0),               # (L, 64, 32) bf16
        post_ln=jnp.stack(post_ln, 0),     # (L, 1, H)
        wgu=jnp.stack(wgu, 0),             # (L, H, 128) bf16
        wd=jnp.stack(wd, 0),               # (L, 64, 32) bf16
        final_ln=norm(next(keys)),         # (1, H)
        lm_head=lin(next(keys), VOCAB, HIDDEN),  # (H, 256) bf16
    )


# ---------------- Gemma forward: ONE pallas_call for the whole model ----------------
def gemma_forward(params, inputs_embeds, attention_mask, position_ids):
    B, S, H = inputs_embeds.shape
    M = B * S

    cos, sin = rotary_cos_sin(position_ids, HEAD_DIM, ROPE_THETA, jnp.float32)
    cos = cos.reshape(M, HEAD_DIM)
    sin = sin.reshape(M, HEAD_DIM)
    mask = attention_mask[:, 0].astype(jnp.float32)          # (B, S, S) additive
    x0 = inputs_embeds.reshape(M, H).astype(jnp.float32)

    const2 = lambda l: (0, 0)
    const3 = lambda l: (0, 0, 0)
    layer3 = lambda l: (l, 0, 0)

    logits = pl.pallas_call(
        functools.partial(_gemma_forward_kernel, batch=B, seq=S),
        out_shape=jax.ShapeDtypeStruct((M, VOCAB), jnp.float32),
        grid=(N_LAYERS,),
        in_specs=[
            pl.BlockSpec((M, H), const2),                # x0 (embeddings)
            pl.BlockSpec((M, HEAD_DIM), const2),         # cos
            pl.BlockSpec((M, HEAD_DIM), const2),         # sin
            pl.BlockSpec((B, S, S), const3),             # additive attention mask
            pl.BlockSpec((None, 1, H), layer3),          # input_ln (1+g)
            pl.BlockSpec((None, H, QKV_DIM), layer3),    # wqkv
            pl.BlockSpec((None, Q_DIM, H), layer3),      # wo
            pl.BlockSpec((None, 1, H), layer3),          # post_ln (1+g)
            pl.BlockSpec((None, H, GU_DIM), layer3),     # w_gate|up
            pl.BlockSpec((None, INTER, H), layer3),      # w_down
            pl.BlockSpec((1, H), const2),                # final_ln (1+g)
            pl.BlockSpec((H, VOCAB), const2),            # lm_head
        ],
        out_specs=pl.BlockSpec((M, VOCAB), const2),
        scratch_shapes=[pltpu.VMEM((M, H), jnp.float32)],   # residual stream carried
        compiler_params=pltpu.CompilerParams(
            # The layer axis carries h -> must be "arbitrary" (not "parallel").
            dimension_semantics=("arbitrary",),
            vmem_limit_bytes=32 * 1024 * 1024,
        ),
    )(x0, cos, sin, mask,
      params["input_ln"], params["wqkv"], params["wo"],
      params["post_ln"], params["wgu"], params["wd"],
      params["final_ln"], params["lm_head"])

    return {"logits": logits.reshape(B, S, VOCAB)}


if __name__ == "__main__":
    B, S = 2, 8
    key = jax.random.PRNGKey(0)
    k_params, k_emb = jax.random.split(key)
    params = init_params(k_params)

    inputs_embeds = jax.random.normal(k_emb, (B, S, HIDDEN), jnp.float32)
    position_ids = jnp.broadcast_to(jnp.arange(S, dtype=jnp.int32)[None, :], (B, S))
    causal = jnp.tril(jnp.ones((S, S), dtype=jnp.bool_))
    attention_mask = jnp.where(causal, 0.0, NEG_INF).astype(jnp.float32)[None, None]
    attention_mask = jnp.broadcast_to(attention_mask, (B, 1, S, S))

    out = gemma_forward(params, inputs_embeds, attention_mask, position_ids)
    logits = jax.block_until_ready(out["logits"])
    assert logits.shape == (B, S, VOCAB)
    assert logits.dtype == jnp.float32
    assert bool(jnp.all(jnp.isfinite(logits)))
    print("KERNEL_OK")
</pallas_src>

<mosaic_0001>
module attributes {stable_mosaic.version = 11 : i64} {
  func.func @_gemma_forward_kernel(%arg0: i32, %arg1: memref<16x32xf32, #tpu.memory_space<vmem>>, %arg2: memref<16x16xf32, #tpu.memory_space<vmem>>, %arg3: memref<16x16xf32, #tpu.memory_space<vmem>>, %arg4: memref<2x8x8xf32, #tpu.memory_space<vmem>>, %arg5: memref<1x1x32xf32, #tpu.memory_space<vmem>>, %arg6: memref<1x32x128xbf16, #tpu.memory_space<vmem>>, %arg7: memref<1x64x32xbf16, #tpu.memory_space<vmem>>, %arg8: memref<1x1x32xf32, #tpu.memory_space<vmem>>, %arg9: memref<1x32x128xbf16, #tpu.memory_space<vmem>>, %arg10: memref<1x64x32xbf16, #tpu.memory_space<vmem>>, %arg11: memref<1x32xf32, #tpu.memory_space<vmem>>, %arg12: memref<32x256xbf16, #tpu.memory_space<vmem>>, %arg13: memref<16x256xf32, #tpu.memory_space<vmem>>, %arg14: memref<16x32xf32, #tpu.memory_space<vmem>>) attributes {dimension_semantics = [#tpu.dimension_semantics<arbitrary>], iteration_bounds = array<i64: 2>, scalar_prefetch = 0 : i64, scratch_operands = 1 : i64, tpu.core_type = #tpu.core_type<tc>, window_params = [{pipeline_mode = #tpu.pipeline_mode<synchronous>, transform_indices = @transform_0, window_bounds = array<i64: 16, 32>}, {pipeline_mode = #tpu.pipeline_mode<synchronous>, transform_indices = @transform_1, window_bounds = array<i64: 16, 16>}, {pipeline_mode = #tpu.pipeline_mode<synchronous>, transform_indices = @transform_2, window_bounds = array<i64: 16, 16>}, {pipeline_mode = #tpu.pipeline_mode<synchronous>, transform_indices = @transform_3, window_bounds = array<i64: 2, 8, 8>}, {transform_indices = @transform_4, window_bounds = array<i64: 1, 1, 32>}, {transform_indices = @transform_5, window_bounds = array<i64: 1, 32, 128>}, {transform_indices = @transform_6, window_bounds = array<i64: 1, 64, 32>}, {transform_indices = @transform_7, window_bounds = array<i64: 1, 1, 32>}, {transform_indices = @transform_8, window_bounds = array<i64: 1, 32, 128>}, {transform_indices = @transform_9, window_bounds = array<i64: 1, 64, 32>}, {pipeline_mode = #tpu.pipeline_mode<synchronous>, transform_indices = @transform_10, window_bounds = array<i64: 1, 32>}, {pipeline_mode = #tpu.pipeline_mode<synchronous>, transform_indices = @transform_11, window_bounds = array<i64: 32, 256>}, {pipeline_mode = #tpu.pipeline_mode<synchronous>, transform_indices = @transform_12, window_bounds = array<i64: 16, 256>}]} {
    %c0_i32 = arith.constant 0 : i32
    %0 = arith.cmpi eq, %arg0, %c0_i32 : i32
    %1 = arith.extui %0 : i1 to i32
    %c0_i32_0 = arith.constant 0 : i32
    %2 = arith.cmpi ne, %1, %c0_i32_0 : i32
    scf.if %2 {
      %c0_91 = arith.constant 0 : index
      %c0_92 = arith.constant 0 : index
      %306 = vector.load %arg1[%c0_91, %c0_92] : memref<16x32xf32, #tpu.memory_space<vmem>>, vector<16x32xf32>
      %cst_93 = arith.constant 5.65685415 : f32
      %307 = vector.broadcast %cst_93 : f32 to vector<16x32xf32>
      %308 = arith.mulf %306, %307 : vector<16x32xf32>
      %c0_94 = arith.constant 0 : index
      %c0_95 = arith.constant 0 : index
      %309 = vector.load %arg14[%c0_94, %c0_95] : memref<16x32xf32, #tpu.memory_space<vmem>>, vector<16x32xf32>
      tpu.vector_store %arg14[%c0_94, %c0_95], %308 {strides = array<i32>} : memref<16x32xf32, #tpu.memory_space<vmem>>, vector<16x32xf32>,
    } else {
    }
    %c0 = arith.constant 0 : index
    %c0_1 = arith.constant 0 : index
    %3 = vector.load %arg14[%c0, %c0_1] : memref<16x32xf32, #tpu.memory_space<vmem>>, vector<16x32xf32>
    %c0_2 = arith.constant 0 : index
    %c0_3 = arith.constant 0 : index
    %4 = vector.load %arg2[%c0_2, %c0_3] : memref<16x16xf32, #tpu.memory_space<vmem>>, vector<16x16xf32>
    %c0_4 = arith.constant 0 : index
    %c0_5 = arith.constant 0 : index
    %5 = vector.load %arg3[%c0_4, %c0_5] : memref<16x16xf32, #tpu.memory_space<vmem>>, vector<16x16xf32>
    %c0_6 = arith.constant 0 : index
    %c0_7 = arith.constant 0 : index
    %c0_8 = arith.constant 0 : index
    %6 = vector.load %arg5[%c0_6, %c0_7, %c0_8] : memref<1x1x32xf32, #tpu.memory_space<vmem>>, vector<1x1x32xf32>
    %7 = vector.shape_cast %6 : vector<1x1x32xf32> to vector<1x32xf32>
    %8 = arith.mulf %3, %3 : vector<16x32xf32>
    %cst = arith.constant dense<0.000000e+00> : vector<16xf32>
    %9 = vector.multi_reduction <add>, %8, %cst [1] : vector<16x32xf32> to vector<16xf32>
    %10 = vector.shape_cast %9 : vector<16xf32> to vector<16x1xf32>
    %cst_9 = arith.constant 3.200000e+01 : f32
    %11 = vector.broadcast %cst_9 : f32 to vector<16x1xf32>
    %12 = arith.divf %10, %11 : vector<16x1xf32>
    %cst_10 = arith.constant 9.99999997E-7 : f32
    %13 = vector.broadcast %cst_10 : f32 to vector<16x1xf32>
    %14 = arith.addf %12, %13 : vector<16x1xf32>
    %15 = math.rsqrt %14 : vector<16x1xf32>
    %16 = vector.broadcast %15 : vector<16x1xf32> to vector<16x32xf32>
    %17 = arith.mulf %3, %16 : vector<16x32xf32>
    %18 = vector.broadcast %7 : vector<1x32xf32> to vector<16x32xf32>
    %19 = arith.mulf %17, %18 : vector<16x32xf32>
    %20 = arith.truncf %19 : vector<16x32xf32> to vector<16x32xbf16>
    %c0_11 = arith.constant 0 : index
    %c0_12 = arith.constant 0 : index
    %c0_13 = arith.constant 0 : index
    %21 = vector.load %arg6[%c0_11, %c0_12, %c0_13] : memref<1x32x128xbf16, #tpu.memory_space<vmem>>, vector<1x32x128xbf16>
    %22 = vector.shape_cast %21 : vector<1x32x128xbf16> to vector<32x128xbf16>
    %cst_14 = arith.constant dense<0.000000e+00> : vector<16x128xf32>
    %23 = tpu.matmul %20, %22, %cst_14 {dimension_numbers = #tpu.dot_dimension_numbers<[1], [0], [0], [1], [0, 0, 1, 1], [], []>} : vector<16x32xbf16>, vector<32x128xbf16>, vector<16x128xf32> -> vector<16x128xf32>
    %24 = vector.extract_strided_slice %23 {offsets = [0, 0], sizes = [16, 64], strides = [1, 1]} : vector<16x128xf32> to vector<16x64xf32>
    %25 = vector.extract_strided_slice %24 {offsets = [0, 0], sizes = [16, 16], strides = [1, 1]} : vector<16x64xf32> to vector<16x16xf32>
    %26 = vector.extract_strided_slice %25 {offsets = [0, 8], sizes = [16, 8], strides = [1, 1]} : vector<16x16xf32> to vector<16x8xf32>
    %cst_15 = arith.constant 0.000000e+00 : f32
    %27 = vector.broadcast %cst_15 : f32 to vector<16x8xf32>
    %28 = arith.subf %27, %26 : vector<16x8xf32>
    %29 = vector.extract_strided_slice %25 {offsets = [0, 0], sizes = [16, 8], strides = [1, 1]} : vector<16x16xf32> to vector<16x8xf32>
    %30 = tpu.concatenate %28, %29 in 1 : vector<16x8xf32>, vector<16x8xf32> -> vector<16x16xf32>
    %31 = arith.mulf %25, %4 : vector<16x16xf32>
    %32 = arith.mulf %30, %5 : vector<16x16xf32>
    %33 = arith.addf %31, %32 : vector<16x16xf32>
    %34 = vector.extract_strided_slice %24 {offsets = [0, 16], sizes = [16, 16], strides = [1, 1]} : vector<16x64xf32> to vector<16x16xf32>
    %35 = vector.extract_strided_slice %34 {offsets = [0, 8], sizes = [16, 8], strides = [1, 1]} : vector<16x16xf32> to vector<16x8xf32>
    %cst_16 = arith.constant 0.000000e+00 : f32
    %36 = vector.broadcast %cst_16 : f32 to vector<16x8xf32>
    %37 = arith.subf %36, %35 : vector<16x8xf32>
    %38 = vector.extract_strided_slice %34 {offsets = [0, 0], sizes = [16, 8], strides = [1, 1]} : vector<16x16xf32> to vector<16x8xf32>
    %39 = tpu.concatenate %37, %38 in 1 : vector<16x8xf32>, vector<16x8xf32> -> vector<16x16xf32>
    %40 = arith.mulf %34, %4 : vector<16x16xf32>
    %41 = arith.mulf %39, %5 : vector<16x16xf32>
    %42 = arith.addf %40, %41 : vector<16x16xf32>
    %43 = vector.extract_strided_slice %24 {offsets = [0, 32], sizes = [16, 16], strides = [1, 1]} : vector<16x64xf32> to vector<16x16xf32>
    %44 = vector.extract_strided_slice %43 {offsets = [0, 8], sizes = [16, 8], strides = [1, 1]} : vector<16x16xf32> to vector<16x8xf32>
    %cst_17 = arith.constant 0.000000e+00 : f32
    %45 = vector.broadcast %cst_17 : f32 to vector<16x8xf32>
    %46 = arith.subf %45, %44 : vector<16x8xf32>
    %47 = vector.extract_strided_slice %43 {offsets = [0, 0], sizes = [16, 8], strides = [1, 1]} : vector<16x16xf32> to vector<16x8xf32>
    %48 = tpu.concatenate %46, %47 in 1 : vector<16x8xf32>, vector<16x8xf32> -> vector<16x16xf32>
    %49 = arith.mulf %43, %4 : vector<16x16xf32>
    %50 = arith.mulf %48, %5 : vector<16x16xf32>
    %51 = arith.addf %49, %50 : vector<16x16xf32>
    %52 = vector.extract_strided_slice %24 {offsets = [0, 48], sizes = [16, 16], strides = [1, 1]} : vector<16x64xf32> to vector<16x16xf32>
    %53 = vector.extract_strided_slice %52 {offsets = [0, 8], sizes = [16, 8], strides = [1, 1]} : vector<16x16xf32> to vector<16x8xf32>
    %cst_18 = arith.constant 0.000000e+00 : f32
    %54 = vector.broadcast %cst_18 : f32 to vector<16x8xf32>
    %55 = arith.subf %54, %53 : vector<16x8xf32>
    %56 = vector.extract_strided_slice %52 {offsets = [0, 0], sizes = [16, 8], strides = [1, 1]} : vector<16x16xf32> to vector<16x8xf32>
    %57 = tpu.concatenate %55, %56 in 1 : vector<16x8xf32>, vector<16x8xf32> -> vector<16x16xf32>
    %58 = arith.mulf %52, %4 : vector<16x16xf32>
    %59 = arith.mulf %57, %5 : vector<16x16xf32>
    %60 = arith.addf %58, %59 : vector<16x16xf32>
    %61 = tpu.concatenate %33, %42, %51, %60 in 1 : vector<16x16xf32>, vector<16x16xf32>, vector<16x16xf32>, vector<16x16xf32> -> vector<16x64xf32>
    %62 = vector.extract_strided_slice %23 {offsets = [0, 64], sizes = [16, 32], strides = [1, 1]} : vector<16x128xf32> to vector<16x32xf32>
    %63 = vector.extract_strided_slice %62 {offsets = [0, 0], sizes = [16, 16], strides = [1, 1]} : vector<16x32xf32> to vector<16x16xf32>
    %64 = vector.extract_strided_slice %63 {offsets = [0, 8], sizes = [16, 8], strides = [1, 1]} : vector<16x16xf32> to vector<16x8xf32>
    %cst_19 = arith.constant 0.000000e+00 : f32
    %65 = vector.broadcast %cst_19 : f32 to vector<16x8xf32>
    %66 = arith.subf %65, %64 : vector<16x8xf32>
    %67 = vector.extract_strided_slice %63 {offsets = [0, 0], sizes = [16, 8], strides = [1, 1]} : vector<16x16xf32> to vector<16x8xf32>
    %68 = tpu.concatenate %66, %67 in 1 : vector<16x8xf32>, vector<16x8xf32> -> vector<16x16xf32>
    %69 = arith.mulf %63, %4 : vector<16x16xf32>
    %70 = arith.mulf %68, %5 : vector<16x16xf32>
    %71 = arith.addf %69, %70 : vector<16x16xf32>
    %72 = vector.extract_strided_slice %62 {offsets = [0, 16], sizes = [16, 16], strides = [1, 1]} : vector<16x32xf32> to vector<16x16xf32>
    %73 = vector.extract_strided_slice %72 {offsets = [0, 8], sizes = [16, 8], strides = [1, 1]} : vector<16x16xf32> to vector<16x8xf32>
    %cst_20 = arith.constant 0.000000e+00 : f32
    %74 = vector.broadcast %cst_20 : f32 to vector<16x8xf32>
    %75 = arith.subf %74, %73 : vector<16x8xf32>
    %76 = vector.extract_strided_slice %72 {offsets = [0, 0], sizes = [16, 8], strides = [1, 1]} : vector<16x16xf32> to vector<16x8xf32>
    %77 = tpu.concatenate %75, %76 in 1 : vector<16x8xf32>, vector<16x8xf32> -> vector<16x16xf32>
    %78 = arith.mulf %72, %4 : vector<16x16xf32>
    %79 = arith.mulf %77, %5 : vector<16x16xf32>
    %80 = arith.addf %78, %79 : vector<16x16xf32>
    %81 = tpu.concatenate %71, %80 in 1 : vector<16x16xf32>, vector<16x16xf32> -> vector<16x32xf32>
    %82 = vector.extract_strided_slice %23 {offsets = [0, 96], sizes = [16, 32], strides = [1, 1]} : vector<16x128xf32> to vector<16x32xf32>
    %c0_21 = arith.constant 0 : index
    %c0_22 = arith.constant 0 : index
    %c0_23 = arith.constant 0 : index
    %83 = vector.load %arg4[%c0_21, %c0_22, %c0_23] : memref<2x8x8xf32, #tpu.memory_space<vmem>>, vector<1x8x8xf32>
    %84 = vector.shape_cast %83 : vector<1x8x8xf32> to vector<8x8xf32>
    %85 = vector.extract_strided_slice %61 {offsets = [0, 0], sizes = [8, 16], strides = [1, 1]} : vector<16x64xf32> to vector<8x16xf32>
    %86 = vector.extract_strided_slice %81 {offsets = [0, 0], sizes = [8, 16], strides = [1, 1]} : vector<16x32xf32> to vector<8x16xf32>
    %87 = vector.extract_strided_slice %82 {offsets = [0, 0], sizes = [8, 16], strides = [1, 1]} : vector<16x32xf32> to vector<8x16xf32>
    %88 = arith.truncf %85 : vector<8x16xf32> to vector<8x16xbf16>
    %89 = arith.truncf %86 : vector<8x16xf32> to vector<8x16xbf16>
    %cst_24 = arith.constant dense<0.000000e+00> : vector<8x8xf32>
    %90 = tpu.matmul %88, %89, %cst_24 {dimension_numbers = #tpu.dot_dimension_numbers<[1], [1], [0], [0], [0, 0, 1, 0], [], []>} : vector<8x16xbf16>, vector<8x16xbf16>, vector<8x8xf32> -> vector<8x8xf32>
    %cst_25 = arith.constant 2.500000e-01 : f32
    %91 = vector.broadcast %cst_25 : f32 to vector<8x8xf32>
    %92 = arith.mulf %90, %91 : vector<8x8xf32>
    %93 = arith.addf %92, %84 : vector<8x8xf32>
    %cst_26 = arith.constant dense<0xFF800000> : vector<8xf32>
    %94 = vector.multi_reduction <maximumf>, %93, %cst_26 [1] : vector<8x8xf32> to vector<8xf32>
    %95 = vector.shape_cast %94 : vector<8xf32> to vector<8x1xf32>
    %96 = vector.broadcast %95 : vector<8x1xf32> to vector<8x8xf32>
    %97 = arith.subf %93, %96 : vector<8x8xf32>
    %98 = math.exp %97 : vector<8x8xf32>
    %cst_27 = arith.constant dense<0.000000e+00> : vector<8xf32>
    %99 = vector.multi_reduction <add>, %98, %cst_27 [1] : vector<8x8xf32> to vector<8xf32>
    %100 = vector.shape_cast %99 : vector<8xf32> to vector<8x1xf32>
    %101 = vector.broadcast %100 : vector<8x1xf32> to vector<8x8xf32>
    %102 = arith.divf %98, %101 : vector<8x8xf32>
    %103 = arith.truncf %102 : vector<8x8xf32> to vector<8x8xbf16>
    %104 = arith.truncf %87 : vector<8x16xf32> to vector<8x16xbf16>
    %cst_28 = arith.constant dense<0.000000e+00> : vector<8x16xf32>
    %105 = tpu.matmul %103, %104, %cst_28 {dimension_numbers = #tpu.dot_dimension_numbers<[1], [0], [0], [1], [0, 0, 1, 1], [], []>} : vector<8x8xbf16>, vector<8x16xbf16>, vector<8x16xf32> -> vector<8x16xf32>
    %106 = vector.extract_strided_slice %61 {offsets = [0, 16], sizes = [8, 16], strides = [1, 1]} : vector<16x64xf32> to vector<8x16xf32>
    %107 = vector.extract_strided_slice %81 {offsets = [0, 0], sizes = [8, 16], strides = [1, 1]} : vector<16x32xf32> to vector<8x16xf32>
    %108 = vector.extract_strided_slice %82 {offsets = [0, 0], sizes = [8, 16], strides = [1, 1]} : vector<16x32xf32> to vector<8x16xf32>
    %109 = arith.truncf %106 : vector<8x16xf32> to vector<8x16xbf16>
    %110 = arith.truncf %107 : vector<8x16xf32> to vector<8x16xbf16>
    %cst_29 = arith.constant dense<0.000000e+00> : vector<8x8xf32>
    %111 = tpu.matmul %109, %110, %cst_29 {dimension_numbers = #tpu.dot_dimension_numbers<[1], [1], [0], [0], [0, 0, 1, 0], [], []>} : vector<8x16xbf16>, vector<8x16xbf16>, vector<8x8xf32> -> vector<8x8xf32>
    %cst_30 = arith.constant 2.500000e-01 : f32
    %112 = vector.broadcast %cst_30 : f32 to vector<8x8xf32>
    %113 = arith.mulf %111, %112 : vector<8x8xf32>
    %114 = arith.addf %113, %84 : vector<8x8xf32>
    %cst_31 = arith.constant dense<0xFF800000> : vector<8xf32>
    %115 = vector.multi_reduction <maximumf>, %114, %cst_31 [1] : vector<8x8xf32> to vector<8xf32>
    %116 = vector.shape_cast %115 : vector<8xf32> to vector<8x1xf32>
    %117 = vector.broadcast %116 : vector<8x1xf32> to vector<8x8xf32>
    %118 = arith.subf %114, %117 : vector<8x8xf32>
    %119 = math.exp %118 : vector<8x8xf32>
    %cst_32 = arith.constant dense<0.000000e+00> : vector<8xf32>
    %120 = vector.multi_reduction <add>, %119, %cst_32 [1] : vector<8x8xf32> to vector<8xf32>
    %121 = vector.shape_cast %120 : vector<8xf32> to vector<8x1xf32>
    %122 = vector.broadcast %121 : vector<8x1xf32> to vector<8x8xf32>
    %123 = arith.divf %119, %122 : vector<8x8xf32>
    %124 = arith.truncf %123 : vector<8x8xf32> to vector<8x8xbf16>
    %125 = arith.truncf %108 : vector<8x16xf32> to vector<8x16xbf16>
    %cst_33 = arith.constant dense<0.000000e+00> : vector<8x16xf32>
    %126 = tpu.matmul %124, %125, %cst_33 {dimension_numbers = #tpu.dot_dimension_numbers<[1], [0], [0], [1], [0, 0, 1, 1], [], []>} : vector<8x8xbf16>, vector<8x16xbf16>, vector<8x16xf32> -> vector<8x16xf32>
    %127 = vector.extract_strided_slice %61 {offsets = [0, 32], sizes = [8, 16], strides = [1, 1]} : vector<16x64xf32> to vector<8x16xf32>
    %128 = vector.extract_strided_slice %81 {offsets = [0, 16], sizes = [8, 16], strides = [1, 1]} : vector<16x32xf32> to vector<8x16xf32>
    %129 = vector.extract_strided_slice %82 {offsets = [0, 16], sizes = [8, 16], strides = [1, 1]} : vector<16x32xf32> to vector<8x16xf32>
    %130 = arith.truncf %127 : vector<8x16xf32> to vector<8x16xbf16>
    %131 = arith.truncf %128 : vector<8x16xf32> to vector<8x16xbf16>
    %cst_34 = arith.constant dense<0.000000e+00> : vector<8x8xf32>
    %132 = tpu.matmul %130, %131, %cst_34 {dimension_numbers = #tpu.dot_dimension_numbers<[1], [1], [0], [0], [0, 0, 1, 0], [], []>} : vector<8x16xbf16>, vector<8x16xbf16>, vector<8x8xf32> -> vector<8x8xf32>
    %cst_35 = arith.constant 2.500000e-01 : f32
    %133 = vector.broadcast %cst_35 : f32 to vector<8x8xf32>
    %134 = arith.mulf %132, %133 : vector<8x8xf32>
    %135 = arith.addf %134, %84 : vector<8x8xf32>
    %cst_36 = arith.constant dense<0xFF800000> : vector<8xf32>
    %136 = vector.multi_reduction <maximumf>, %135, %cst_36 [1] : vector<8x8xf32> to vector<8xf32>
    %137 = vector.shape_cast %136 : vector<8xf32> to vector<8x1xf32>
    %138 = vector.broadcast %137 : vector<8x1xf32> to vector<8x8xf32>
    %139 = arith.subf %135, %138 : vector<8x8xf32>
    %140 = math.exp %139 : vector<8x8xf32>
    %cst_37 = arith.constant dense<0.000000e+00> : vector<8xf32>
    %141 = vector.multi_reduction <add>, %140, %cst_37 [1] : vector<8x8xf32> to vector<8xf32>
    %142 = vector.shape_cast %141 : vector<8xf32> to vector<8x1xf32>
    %143 = vector.broadcast %142 : vector<8x1xf32> to vector<8x8xf32>
    %144 = arith.divf %140, %143 : vector<8x8xf32>
    %145 = arith.truncf %144 : vector<8x8xf32> to vector<8x8xbf16>
    %146 = arith.truncf %129 : vector<8x16xf32> to vector<8x16xbf16>
    %cst_38 = arith.constant dense<0.000000e+00> : vector<8x16xf32>
    %147 = tpu.matmul %145, %146, %cst_38 {dimension_numbers = #tpu.dot_dimension_numbers<[1], [0], [0], [1], [0, 0, 1, 1], [], []>} : vector<8x8xbf16>, vector<8x16xbf16>, vector<8x16xf32> -> vector<8x16xf32>
    %148 = vector.extract_strided_slice %61 {offsets = [0, 48], sizes = [8, 16], strides = [1, 1]} : vector<16x64xf32> to vector<8x16xf32>
    %149 = vector.extract_strided_slice %81 {offsets = [0, 16], sizes = [8, 16], strides = [1, 1]} : vector<16x32xf32> to vector<8x16xf32>
    %150 = vector.extract_strided_slice %82 {offsets = [0, 16], sizes = [8, 16], strides = [1, 1]} : vector<16x32xf32> to vector<8x16xf32>
    %151 = arith.truncf %148 : vector<8x16xf32> to vector<8x16xbf16>
    %152 = arith.truncf %149 : vector<8x16xf32> to vector<8x16xbf16>
    %cst_39 = arith.constant dense<0.000000e+00> : vector<8x8xf32>
    %153 = tpu.matmul %151, %152, %cst_39 {dimension_numbers = #tpu.dot_dimension_numbers<[1], [1], [0], [0], [0, 0, 1, 0], [], []>} : vector<8x16xbf16>, vector<8x16xbf16>, vector<8x8xf32> -> vector<8x8xf32>
    %cst_40 = arith.constant 2.500000e-01 : f32
    %154 = vector.broadcast %cst_40 : f32 to vector<8x8xf32>
    %155 = arith.mulf %153, %154 : vector<8x8xf32>
    %156 = arith.addf %155, %84 : vector<8x8xf32>
    %cst_41 = arith.constant dense<0xFF800000> : vector<8xf32>
    %157 = vector.multi_reduction <maximumf>, %156, %cst_41 [1] : vector<8x8xf32> to vector<8xf32>
    %158 = vector.shape_cast %157 : vector<8xf32> to vector<8x1xf32>
    %159 = vector.broadcast %158 : vector<8x1xf32> to vector<8x8xf32>
    %160 = arith.subf %156, %159 : vector<8x8xf32>
    %161 = math.exp %160 : vector<8x8xf32>
    %cst_42 = arith.constant dense<0.000000e+00> : vector<8xf32>
    %162 = vector.multi_reduction <add>, %161, %cst_42 [1] : vector<8x8xf32> to vector<8xf32>
    %163 = vector.shape_cast %162 : vector<8xf32> to vector<8x1xf32>
    %164 = vector.broadcast %163 : vector<8x1xf32> to vector<8x8xf32>
    %165 = arith.divf %161, %164 : vector<8x8xf32>
    %166 = arith.truncf %165 : vector<8x8xf32> to vector<8x8xbf16>
    %167 = arith.truncf %150 : vector<8x16xf32> to vector<8x16xbf16>
    %cst_43 = arith.constant dense<0.000000e+00> : vector<8x16xf32>
    %168 = tpu.matmul %166, %167, %cst_43 {dimension_numbers = #tpu.dot_dimension_numbers<[1], [0], [0], [1], [0, 0, 1, 1], [], []>} : vector<8x8xbf16>, vector<8x16xbf16>, vector<8x16xf32> -> vector<8x16xf32>
    %169 = tpu.concatenate %105, %126, %147, %168 in 1 : vector<8x16xf32>, vector<8x16xf32>, vector<8x16xf32>, vector<8x16xf32> -> vector<8x64xf32>
    %c1 = arith.constant 1 : index
    %c0_44 = arith.constant 0 : index
    %c0_45 = arith.constant 0 : index
    %170 = vector.load %arg4[%c1, %c0_44, %c0_45] : memref<2x8x8xf32, #tpu.memory_space<vmem>>, vector<1x8x8xf32>
    %171 = vector.shape_cast %170 : vector<1x8x8xf32> to vector<8x8xf32>
    %172 = vector.extract_strided_slice %61 {offsets = [8, 0], sizes = [8, 16], strides = [1, 1]} : vector<16x64xf32> to vector<8x16xf32>
    %173 = vector.extract_strided_slice %81 {offsets = [8, 0], sizes = [8, 16], strides = [1, 1]} : vector<16x32xf32> to vector<8x16xf32>
    %174 = vector.extract_strided_slice %82 {offsets = [8, 0], sizes = [8, 16], strides = [1, 1]} : vector<16x32xf32> to vector<8x16xf32>
    %175 = arith.truncf %172 : vector<8x16xf32> to vector<8x16xbf16>
    %176 = arith.truncf %173 : vector<8x16xf32> to vector<8x16xbf16>
    %cst_46 = arith.constant dense<0.000000e+00> : vector<8x8xf32>
    %177 = tpu.matmul %175, %176, %cst_46 {dimension_numbers = #tpu.dot_dimension_numbers<[1], [1], [0], [0], [0, 0, 1, 0], [], []>} : vector<8x16xbf16>, vector<8x16xbf16>, vector<8x8xf32> -> vector<8x8xf32>
    %cst_47 = arith.constant 2.500000e-01 : f32
    %178 = vector.broadcast %cst_47 : f32 to vector<8x8xf32>
    %179 = arith.mulf %177, %178 : vector<8x8xf32>
    %180 = arith.addf %179, %171 : vector<8x8xf32>
    %cst_48 = arith.constant dense<0xFF800000> : vector<8xf32>
    %181 = vector.multi_reduction <maximumf>, %180, %cst_48 [1] : vector<8x8xf32> to vector<8xf32>
    %182 = vector.shape_cast %181 : vector<8xf32> to vector<8x1xf32>
    %183 = vector.broadcast %182 : vector<8x1xf32> to vector<8x8xf32>
    %184 = arith.subf %180, %183 : vector<8x8xf32>
    %185 = math.exp %184 : vector<8x8xf32>
    %cst_49 = arith.constant dense<0.000000e+00> : vector<8xf32>
    %186 = vector.multi_reduction <add>, %185, %cst_49 [1] : vector<8x8xf32> to vector<8xf32>
    %187 = vector.shape_cast %186 : vector<8xf32> to vector<8x1xf32>
    %188 = vector.broadcast %187 : vector<8x1xf32> to vector<8x8xf32>
    %189 = arith.divf %185, %188 : vector<8x8xf32>
    %190 = arith.truncf %189 : vector<8x8xf32> to vector<8x8xbf16>
    %191 = arith.truncf %174 : vector<8x16xf32> to vector<8x16xbf16>
    %cst_50 = arith.constant dense<0.000000e+00> : vector<8x16xf32>
    %192 = tpu.matmul %190, %191, %cst_50 {dimension_numbers = #tpu.dot_dimension_numbers<[1], [0], [0], [1], [0, 0, 1, 1], [], []>} : vector<8x8xbf16>, vector<8x16xbf16>, vector<8x16xf32> -> vector<8x16xf32>
    %193 = vector.extract_strided_slice %61 {offsets = [8, 16], sizes = [8, 16], strides = [1, 1]} : vector<16x64xf32> to vector<8x16xf32>
    %194 = vector.extract_strided_slice %81 {offsets = [8, 0], sizes = [8, 16], strides = [1, 1]} : vector<16x32xf32> to vector<8x16xf32>
    %195 = vector.extract_strided_slice %82 {offsets = [8, 0], sizes = [8, 16], strides = [1, 1]} : vector<16x32xf32> to vector<8x16xf32>
    %196 = arith.truncf %193 : vector<8x16xf32> to vector<8x16xbf16>
    %197 = arith.truncf %194 : vector<8x16xf32> to vector<8x16xbf16>
    %cst_51 = arith.constant dense<0.000000e+00> : vector<8x8xf32>
    %198 = tpu.matmul %196, %197, %cst_51 {dimension_numbers = #tpu.dot_dimension_numbers<[1], [1], [0], [0], [0, 0, 1, 0], [], []>} : vector<8x16xbf16>, vector<8x16xbf16>, vector<8x8xf32> -> vector<8x8xf32>
    %cst_52 = arith.constant 2.500000e-01 : f32
    %199 = vector.broadcast %cst_52 : f32 to vector<8x8xf32>
    %200 = arith.mulf %198, %199 : vector<8x8xf32>
    %201 = arith.addf %200, %171 : vector<8x8xf32>
    %cst_53 = arith.constant dense<0xFF800000> : vector<8xf32>
    %202 = vector.multi_reduction <maximumf>, %201, %cst_53 [1] : vector<8x8xf32> to vector<8xf32>
    %203 = vector.shape_cast %202 : vector<8xf32> to vector<8x1xf32>
    %204 = vector.broadcast %203 : vector<8x1xf32> to vector<8x8xf32>
    %205 = arith.subf %201, %204 : vector<8x8xf32>
    %206 = math.exp %205 : vector<8x8xf32>
    %cst_54 = arith.constant dense<0.000000e+00> : vector<8xf32>
    %207 = vector.multi_reduction <add>, %206, %cst_54 [1] : vector<8x8xf32> to vector<8xf32>
    %208 = vector.shape_cast %207 : vector<8xf32> to vector<8x1xf32>
    %209 = vector.broadcast %208 : vector<8x1xf32> to vector<8x8xf32>
    %210 = arith.divf %206, %209 : vector<8x8xf32>
    %211 = arith.truncf %210 : vector<8x8xf32> to vector<8x8xbf16>
    %212 = arith.truncf %195 : vector<8x16xf32> to vector<8x16xbf16>
    %cst_55 = arith.constant dense<0.000000e+00> : vector<8x16xf32>
    %213 = tpu.matmul %211, %212, %cst_55 {dimension_numbers = #tpu.dot_dimension_numbers<[1], [0], [0], [1], [0, 0, 1, 1], [], []>} : vector<8x8xbf16>, vector<8x16xbf16>, vector<8x16xf32> -> vector<8x16xf32>
    %214 = vector.extract_strided_slice %61 {offsets = [8, 32], sizes = [8, 16], strides = [1, 1]} : vector<16x64xf32> to vector<8x16xf32>
    %215 = vector.extract_strided_slice %81 {offsets = [8, 16], sizes = [8, 16], strides = [1, 1]} : vector<16x32xf32> to vector<8x16xf32>
    %216 = vector.extract_strided_slice %82 {offsets = [8, 16], sizes = [8, 16], strides = [1, 1]} : vector<16x32xf32> to vector<8x16xf32>
    %217 = arith.truncf %214 : vector<8x16xf32> to vector<8x16xbf16>
    %218 = arith.truncf %215 : vector<8x16xf32> to vector<8x16xbf16>
    %cst_56 = arith.constant dense<0.000000e+00> : vector<8x8xf32>
    %219 = tpu.matmul %217, %218, %cst_56 {dimension_numbers = #tpu.dot_dimension_numbers<[1], [1], [0], [0], [0, 0, 1, 0], [], []>} : vector<8x16xbf16>, vector<8x16xbf16>, vector<8x8xf32> -> vector<8x8xf32>
    %cst_57 = arith.constant 2.500000e-01 : f32
    %220 = vector.broadcast %cst_57 : f32 to vector<8x8xf32>
    %221 = arith.mulf %219, %220 : vector<8x8xf32>
    %222 = arith.addf %221, %171 : vector<8x8xf32>
    %cst_58 = arith.constant dense<0xFF800000> : vector<8xf32>
    %223 = vector.multi_reduction <maximumf>, %222, %cst_58 [1] : vector<8x8xf32> to vector<8xf32>
    %224 = vector.shape_cast %223 : vector<8xf32> to vector<8x1xf32>
    %225 = vector.broadcast %224 : vector<8x1xf32> to vector<8x8xf32>
    %226 = arith.subf %222, %225 : vector<8x8xf32>
    %227 = math.exp %226 : vector<8x8xf32>
    %cst_59 = arith.constant dense<0.000000e+00> : vector<8xf32>
    %228 = vector.multi_reduction <add>, %227, %cst_59 [1] : vector<8x8xf32> to vector<8xf32>
    %229 = vector.shape_cast %228 : vector<8xf32> to vector<8x1xf32>
    %230 = vector.broadcast %229 : vector<8x1xf32> to vector<8x8xf32>
    %231 = arith.divf %227, %230 : vector<8x8xf32>
    %232 = arith.truncf %231 : vector<8x8xf32> to vector<8x8xbf16>
    %233 = arith.truncf %216 : vector<8x16xf32> to vector<8x16xbf16>
    %cst_60 = arith.constant dense<0.000000e+00> : vector<8x16xf32>
    %234 = tpu.matmul %232, %233, %cst_60 {dimension_numbers = #tpu.dot_dimension_numbers<[1], [0], [0], [1], [0, 0, 1, 1], [], []>} : vector<8x8xbf16>, vector<8x16xbf16>, vector<8x16xf32> -> vector<8x16xf32>
    %235 = vector.extract_strided_slice %61 {offsets = [8, 48], sizes = [8, 16], strides = [1, 1]} : vector<16x64xf32> to vector<8x16xf32>
    %236 = vector.extract_strided_slice %81 {offsets = [8, 16], sizes = [8, 16], strides = [1, 1]} : vector<16x32xf32> to vector<8x16xf32>
    %237 = vector.extract_strided_slice %82 {offsets = [8, 16], sizes = [8, 16], strides = [1, 1]} : vector<16x32xf32> to vector<8x16xf32>
    %238 = arith.truncf %235 : vector<8x16xf32> to vector<8x16xbf16>
    %239 = arith.truncf %236 : vector<8x16xf32> to vector<8x16xbf16>
    %cst_61 = arith.constant dense<0.000000e+00> : vector<8x8xf32>
    %240 = tpu.matmul %238, %239, %cst_61 {dimension_numbers = #tpu.dot_dimension_numbers<[1], [1], [0], [0], [0, 0, 1, 0], [], []>} : vector<8x16xbf16>, vector<8x16xbf16>, vector<8x8xf32> -> vector<8x8xf32>
    %cst_62 = arith.constant 2.500000e-01 : f32
    %241 = vector.broadcast %cst_62 : f32 to vector<8x8xf32>
    %242 = arith.mulf %240, %241 : vector<8x8xf32>
    %243 = arith.addf %242, %171 : vector<8x8xf32>
    %cst_63 = arith.constant dense<0xFF800000> : vector<8xf32>
    %244 = vector.multi_reduction <maximumf>, %243, %cst_63 [1] : vector<8x8xf32> to vector<8xf32>
    %245 = vector.shape_cast %244 : vector<8xf32> to vector<8x1xf32>
    %246 = vector.broadcast %245 : vector<8x1xf32> to vector<8x8xf32>
    %247 = arith.subf %243, %246 : vector<8x8xf32>
    %248 = math.exp %247 : vector<8x8xf32>
    %cst_64 = arith.constant dense<0.000000e+00> : vector<8xf32>
    %249 = vector.multi_reduction <add>, %248, %cst_64 [1] : vector<8x8xf32> to vector<8xf32>
    %250 = vector.shape_cast %249 : vector<8xf32> to vector<8x1xf32>
    %251 = vector.broadcast %250 : vector<8x1xf32> to vector<8x8xf32>
    %252 = arith.divf %248, %251 : vector<8x8xf32>
    %253 = arith.truncf %252 : vector<8x8xf32> to vector<8x8xbf16>
    %254 = arith.truncf %237 : vector<8x16xf32> to vector<8x16xbf16>
    %cst_65 = arith.constant dense<0.000000e+00> : vector<8x16xf32>
    %255 = tpu.matmul %253, %254, %cst_65 {dimension_numbers = #tpu.dot_dimension_numbers<[1], [0], [0], [1], [0, 0, 1, 1], [], []>} : vector<8x8xbf16>, vector<8x16xbf16>, vector<8x16xf32> -> vector<8x16xf32>
    %256 = tpu.concatenate %192, %213, %234, %255 in 1 : vector<8x16xf32>, vector<8x16xf32>, vector<8x16xf32>, vector<8x16xf32> -> vector<8x64xf32>
    %257 = tpu.concatenate %169, %256 in 0 : vector<8x64xf32>, vector<8x64xf32> -> vector<16x64xf32>
    %258 = arith.truncf %257 : vector<16x64xf32> to vector<16x64xbf16>
    %c0_66 = arith.constant 0 : index
    %c0_67 = arith.constant 0 : index
    %c0_68 = arith.constant 0 : index
    %259 = vector.load %arg7[%c0_66, %c0_67, %c0_68] : memref<1x64x32xbf16, #tpu.memory_space<vmem>>, vector<1x64x32xbf16>
    %260 = vector.shape_cast %259 : vector<1x64x32xbf16> to vector<64x32xbf16>
    %cst_69 = arith.constant dense<0.000000e+00> : vector<16x32xf32>
    %261 = tpu.matmul %258, %260, %cst_69 {dimension_numbers = #tpu.dot_dimension_numbers<[1], [0], [0], [1], [0, 0, 1, 1], [], []>} : vector<16x64xbf16>, vector<64x32xbf16>, vector<16x32xf32> -> vector<16x32xf32>
    %262 = arith.addf %3, %261 : vector<16x32xf32>
    %c0_70 = arith.constant 0 : index
    %c0_71 = arith.constant 0 : index
    %c0_72 = arith.constant 0 : index
    %263 = vector.load %arg8[%c0_70, %c0_71, %c0_72] : memref<1x1x32xf32, #tpu.memory_space<vmem>>, vector<1x1x32xf32>
    %264 = vector.shape_cast %263 : vector<1x1x32xf32> to vector<1x32xf32>
    %265 = arith.mulf %262, %262 : vector<16x32xf32>
    %cst_73 = arith.constant dense<0.000000e+00> : vector<16xf32>
    %266 = vector.multi_reduction <add>, %265, %cst_73 [1] : vector<16x32xf32> to vector<16xf32>
    %267 = vector.shape_cast %266 : vector<16xf32> to vector<16x1xf32>
    %cst_74 = arith.constant 3.200000e+01 : f32
    %268 = vector.broadcast %cst_74 : f32 to vector<16x1xf32>
    %269 = arith.divf %267, %268 : vector<16x1xf32>
    %cst_75 = arith.constant 9.99999997E-7 : f32
    %270 = vector.broadcast %cst_75 : f32 to vector<16x1xf32>
    %271 = arith.addf %269, %270 : vector<16x1xf32>
    %272 = math.rsqrt %271 : vector<16x1xf32>
    %273 = vector.broadcast %272 : vector<16x1xf32> to vector<16x32xf32>
    %274 = arith.mulf %262, %273 : vector<16x32xf32>
    %275 = vector.broadcast %264 : vector<1x32xf32> to vector<16x32xf32>
    %276 = arith.mulf %274, %275 : vector<16x32xf32>
    %277 = arith.truncf %276 : vector<16x32xf32> to vector<16x32xbf16>
    %c0_76 = arith.constant 0 : index
    %c0_77 = arith.constant 0 : index
    %c0_78 = arith.constant 0 : index
    %278 = vector.load %arg9[%c0_76, %c0_77, %c0_78] : memref<1x32x128xbf16, #tpu.memory_space<vmem>>, vector<1x32x128xbf16>
    %279 = vector.shape_cast %278 : vector<1x32x128xbf16> to vector<32x128xbf16>
    %cst_79 = arith.constant dense<0.000000e+00> : vector<16x128xf32>
    %280 = tpu.matmul %277, %279, %cst_79 {dimension_numbers = #tpu.dot_dimension_numbers<[1], [0], [0], [1], [0, 0, 1, 1], [], []>} : vector<16x32xbf16>, vector<32x128xbf16>, vector<16x128xf32> -> vector<16x128xf32>
    %281 = vector.extract_strided_slice %280 {offsets = [0, 0], sizes = [16, 64], strides = [1, 1]} : vector<16x128xf32> to vector<16x64xf32>
    %cst_80 = arith.constant 5.000000e-01 : f32
    %282 = vector.broadcast %cst_80 : f32 to vector<16x64xf32>
    %283 = arith.mulf %282, %281 : vector<16x64xf32>
    %cst_81 = arith.constant 4.471500e-02 : f32
    %284 = vector.broadcast %cst_81 : f32 to vector<16x64xf32>
    %285 = arith.mulf %284, %281 : vector<16x64xf32>
    %286 = arith.mulf %285, %281 : vector<16x64xf32>
    %287 = arith.mulf %286, %281 : vector<16x64xf32>
    %288 = arith.addf %281, %287 : vector<16x64xf32>
    %cst_82 = arith.constant 0.797884583 : f32
    %289 = vector.broadcast %cst_82 : f32 to vector<16x64xf32>
    %290 = arith.mulf %289, %288 : vector<16x64xf32>
    %291 = math.tanh %290 : vector<16x64xf32>
    %cst_83 = arith.constant 1.000000e+00 : f32
    %292 = vector.broadcast %cst_83 : f32 to vector<16x64xf32>
    %293 = arith.addf %292, %291 : vector<16x64xf32>
    %294 = arith.mulf %283, %293 : vector<16x64xf32>
    %295 = vector.extract_strided_slice %280 {offsets = [0, 64], sizes = [16, 64], strides = [1, 1]} : vector<16x128xf32> to vector<16x64xf32>
    %296 = arith.mulf %294, %295 : vector<16x64xf32>
    %297 = arith.truncf %296 : vector<16x64xf32> to vector<16x64xbf16>
    %c0_84 = arith.constant 0 : index
    %c0_85 = arith.constant 0 : index
    %c0_86 = arith.constant 0 : index
    %298 = vector.load %arg10[%c0_84, %c0_85, %c0_86] : memref<1x64x32xbf16, #tpu.memory_space<vmem>>, vector<1x64x32xbf16>
    %299 = vector.shape_cast %298 : vector<1x64x32xbf16> to vector<64x32xbf16>
    %cst_87 = arith.constant dense<0.000000e+00> : vector<16x32xf32>
    %300 = tpu.matmul %297, %299, %cst_87 {dimension_numbers = #tpu.dot_dimension_numbers<[1], [0], [0], [1], [0, 0, 1, 1], [], []>} : vector<16x64xbf16>, vector<64x32xbf16>, vector<16x32xf32> -> vector<16x32xf32>
    %301 = arith.addf %262, %300 : vector<16x32xf32>
    %c0_88 = arith.constant 0 : index
    %c0_89 = arith.constant 0 : index
    %302 = vector.load %arg14[%c0_88, %c0_89] : memref<16x32xf32, #tpu.memory_space<vmem>>, vector<16x32xf32>
    tpu.vector_store %arg14[%c0_88, %c0_89], %301 {strides = array<i32>} : memref<16x32xf32, #tpu.memory_space<vmem>>, vector<16x32xf32>,
    %c1_i32 = arith.constant 1 : i32
    %303 = arith.cmpi eq, %arg0, %c1_i32 : i32
    %304 = arith.extui %303 : i1 to i32
    %c0_i32_90 = arith.constant 0 : i32
    %305 = arith.cmpi ne, %304, %c0_i32_90 : i32
    scf.if %305 {
      %c0_91 = arith.constant 0 : index
      %c0_92 = arith.constant 0 : index
      %306 = vector.load %arg11[%c0_91, %c0_92] : memref<1x32xf32, #tpu.memory_space<vmem>>, vector<1x32xf32>
      %307 = arith.mulf %301, %301 : vector<16x32xf32>
      %cst_93 = arith.constant dense<0.000000e+00> : vector<16xf32>
      %308 = vector.multi_reduction <add>, %307, %cst_93 [1] : vector<16x32xf32> to vector<16xf32>
      %309 = vector.shape_cast %308 : vector<16xf32> to vector<16x1xf32>
      %cst_94 = arith.constant 3.200000e+01 : f32
      %310 = vector.broadcast %cst_94 : f32 to vector<16x1xf32>
      %311 = arith.divf %309, %310 : vector<16x1xf32>
      %cst_95 = arith.constant 9.99999997E-7 : f32
      %312 = vector.broadcast %cst_95 : f32 to vector<16x1xf32>
      %313 = arith.addf %311, %312 : vector<16x1xf32>
      %314 = math.rsqrt %313 : vector<16x1xf32>
      %315 = vector.broadcast %314 : vector<16x1xf32> to vector<16x32xf32>
      %316 = arith.mulf %301, %315 : vector<16x32xf32>
      %317 = vector.broadcast %306 : vector<1x32xf32> to vector<16x32xf32>
      %318 = arith.mulf %316, %317 : vector<16x32xf32>
      %319 = arith.truncf %318 : vector<16x32xf32> to vector<16x32xbf16>
      %c0_96 = arith.constant 0 : index
      %c0_97 = arith.constant 0 : index
      %320 = vector.load %arg12[%c0_96, %c0_97] : memref<32x256xbf16, #tpu.memory_space<vmem>>, vector<32x256xbf16>
      %cst_98 = arith.constant dense<0.000000e+00> : vector<16x256xf32>
      %321 = tpu.matmul %319, %320, %cst_98 {dimension_numbers = #tpu.dot_dimension_numbers<[1], [0], [0], [1], [0, 0, 1, 1], [], []>} : vector<16x32xbf16>, vector<32x256xbf16>, vector<16x256xf32> -> vector<16x256xf32>
      %c0_99 = arith.constant 0 : index
      %c0_100 = arith.constant 0 : index
      %322 = vector.load %arg13[%c0_99, %c0_100] : memref<16x256xf32, #tpu.memory_space<vmem>>, vector<16x256xf32>
      tpu.vector_store %arg13[%c0_99, %c0_100], %321 {strides = array<i32>} : memref<16x256xf32, #tpu.memory_space<vmem>>, vector<16x256xf32>,
    } else {
    }
    return
  }
  func.func @transform_0(%arg0: i32) -> (i32, i32) {
    %c0_i32 = arith.constant 0 : i32
    %c0_i32_0 = arith.constant 0 : i32
    %c0_i32_1 = arith.constant 0 : i32
    return %c0_i32, %c0_i32_0 : i32, i32
  }
  func.func @transform_1(%arg0: i32) -> (i32, i32) {
    %c0_i32 = arith.constant 0 : i32
    %c0_i32_0 = arith.constant 0 : i32
    %c0_i32_1 = arith.constant 0 : i32
    return %c0_i32, %c0_i32_0 : i32, i32
  }
  func.func @transform_2(%arg0: i32) -> (i32, i32) {
    %c0_i32 = arith.constant 0 : i32
    %c0_i32_0 = arith.constant 0 : i32
    %c0_i32_1 = arith.constant 0 : i32
    return %c0_i32, %c0_i32_0 : i32, i32
  }
  func.func @transform_3(%arg0: i32) -> (i32, i32, i32) {
    %c0_i32 = arith.constant 0 : i32
    %c0_i32_0 = arith.constant 0 : i32
    %c0_i32_1 = arith.constant 0 : i32
    %c0_i32_2 = arith.constant 0 : i32
    return %c0_i32, %c0_i32_0, %c0_i32_1 : i32, i32, i32
  }
  func.func @transform_4(%arg0: i32) -> (i32, i32, i32) {
    %c0_i32 = arith.constant 0 : i32
    %c0_i32_0 = arith.constant 0 : i32
    %c0_i32_1 = arith.constant 0 : i32
    return %arg0, %c0_i32, %c0_i32_0 : i32, i32, i32
  }
  func.func @transform_5(%arg0: i32) -> (i32, i32, i32) {
    %c0_i32 = arith.constant 0 : i32
    %c0_i32_0 = arith.constant 0 : i32
    %c0_i32_1 = arith.constant 0 : i32
    return %arg0, %c0_i32, %c0_i32_0 : i32, i32, i32
  }
  func.func @transform_6(%arg0: i32) -> (i32, i32, i32) {
    %c0_i32 = arith.constant 0 : i32
    %c0_i32_0 = arith.constant 0 : i32
    %c0_i32_1 = arith.constant 0 : i32
    return %arg0, %c0_i32, %c0_i32_0 : i32, i32, i32
  }
  func.func @transform_7(%arg0: i32) -> (i32, i32, i32) {
    %c0_i32 = arith.constant 0 : i32
    %c0_i32_0 = arith.constant 0 : i32
    %c0_i32_1 = arith.constant 0 : i32
    return %arg0, %c0_i32, %c0_i32_0 : i32, i32, i32
  }
  func.func @transform_8(%arg0: i32) -> (i32, i32, i32) {
    %c0_i32 = arith.constant 0 : i32
    %c0_i32_0 = arith.constant 0 : i32
    %c0_i32_1 = arith.constant 0 : i32
    return %arg0, %c0_i32, %c0_i32_0 : i32, i32, i32
  }
  func.func @transform_9(%arg0: i32) -> (i32, i32, i32) {
    %c0_i32 = arith.constant 0 : i32
    %c0_i32_0 = arith.constant 0 : i32
    %c0_i32_1 = arith.constant 0 : i32
    return %arg0, %c0_i32, %c0_i32_0 : i32, i32, i32
  }
  func.func @transform_10(%arg0: i32) -> (i32, i32) {
    %c0_i32 = arith.constant 0 : i32
    %c0_i32_0 = arith.constant 0 : i32
    %c0_i32_1 = arith.constant 0 : i32
    return %c0_i32, %c0_i32_0 : i32, i32
  }
  func.func @transform_11(%arg0: i32) -> (i32, i32) {
    %c0_i32 = arith.constant 0 : i32
    %c0_i32_0 = arith.constant 0 : i32
    %c0_i32_1 = arith.constant 0 : i32
    return %c0_i32, %c0_i32_0 : i32, i32
  }
  func.func @transform_12(%arg0: i32) -> (i32, i32) {
    %c0_i32 = arith.constant 0 : i32
    %c0_i32_0 = arith.constant 0 : i32
    %c0_i32_1 = arith.constant 0 : i32
    return %c0_i32, %c0_i32_0 : i32, i32
  }
}

</mosaic_0001>

<llo_original>
// kernel: tpu_custom_call.1
$region0: #{tpu_custom_call.1}
  #allocation0 [shape = 'u32[]', space=smem, size = 0x4, offset = 0x4, fixed_abs, tag = 'smem constant byte address 0x4 - core index']
  #allocation1 [shape = 'u32[144,128]{1,0:T(1,128)}', space=vmem, size = 0x12000, scoped, tag = 'internal scratch']
  #allocation2 [shape = 'f32[16,32]{1,0:T(8,128)}', space=vmem, size = 0x2000, scoped, tag = 'scratch operand']
  %s0 = inlined_call_operand.vmem [shape: f32[16,32], index: 0, kind: input, shape index: {}]
  %s1 = inlined_call_operand.vmem [shape: f32[16,16], index: 1, kind: input, shape index: {}]
  %s2 = inlined_call_operand.vmem [shape: f32[16,16], index: 2, kind: input, shape index: {}]
  %s3 = inlined_call_operand.vmem [shape: f32[2,8,8], index: 3, kind: input, shape index: {}]
  %s4 = inlined_call_operand.vmem [shape: f32[2,1,32], index: 4, kind: input, shape index: {}]
  %s5 = inlined_call_operand.vmem [shape: bf16[2,32,128], index: 5, kind: input, shape index: {}]
  %s6 = inlined_call_operand.vmem [shape: bf16[2,64,32], index: 6, kind: input, shape index: {}]
  %s7 = inlined_call_operand.vmem [shape: f32[2,1,32], index: 7, kind: input, shape index: {}]
  %s8 = inlined_call_operand.vmem [shape: bf16[2,32,128], index: 8, kind: input, shape index: {}]
  %s9 = inlined_call_operand.vmem [shape: bf16[2,64,32], index: 9, kind: input, shape index: {}]
  %s10 = inlined_call_operand.vmem [shape: f32[1,32], index: 10, kind: input, shape index: {}]
  %s11 = inlined_call_operand.vmem [shape: bf16[32,256], index: 11, kind: input, shape index: {}]
  %s12 = inlined_call_operand.hbm [shape: f32[16,256], index: 12, kind: output, shape index: {}]
  %s13 = sld [smem:[#allocation0]]
  $region89: #{tpu_custom_call.1} parent=0
    _
  %s15 = ssub.s32 1, %s13
  %s16 = scalar_select 0, %s15, %s13
  $region1: #{tpu_custom_call.1} parent=0
    #allocation3 [shape = 'u8[16384]{0}', space=vmem, size = 0x4000, scoped, tag = 'output window, operand 0, single buffered']
    #allocation4 [shape = 's32[2]{0}', space=sflag, size = 0x8, scoped, tag = 'scoped memory for tpu_custom_call.1']
    %17 = vsyncpa [#allocation4], 0
    loop: start=0, step=1, limit=4
    $region2: #{tpu_custom_call.1} parent=1 // loop_pre_header
      _
    $region3: #{tpu_custom_call.1} parent=1 // loop_header
      %s19 = sphi 0, %s23
      %p20 = scmp.ge.s32.totalorder %s19, 4
      %s27 = sphi 0, %s27
      %s29 = sphi 0, %s27
      %s30 = sphi 0, %s29
      %s44 = sphi 0, %s30
      %s48 = sphi 0, %s48
      %s50 = sphi 0, %s48
      %s51 = sphi 0, %s50
      %s65 = sphi 0, %s51
      %s69 = sphi 0, %s69
      %s71 = sphi 0, %s69
      %s72 = sphi 0, %s71
      %s86 = sphi 0, %s72
      %s90 = sphi 0, %s90
      %s92 = sphi 0, %s90
      %s93 = sphi 0, %s92
      %s107 = sphi 0, %s93
      %s113 = sphi 0, %s115
      %s116 = sphi 0, %s113
      %s117 = sphi 0, %s116
      %s133 = sphi 0, %s117
      %s139 = sphi 0, %s141
      %s142 = sphi 0, %s139
      %s143 = sphi 0, %s142
      %s159 = sphi 0, %s143
      %s165 = sphi 0, %s167
      %s168 = sphi 0, %s165
      %s169 = sphi 0, %s168
      %s185 = sphi 0, %s169
      %s191 = sphi 0, %s193
      %s194 = sphi 0, %s191
      %s195 = sphi 0, %s194
      %s211 = sphi 0, %s195
      %s217 = sphi 0, %s219
      %s220 = sphi 0, %s217
      %s221 = sphi 0, %s220
      %s237 = sphi 0, %s221
      %s243 = sphi 0, %s245
      %s246 = sphi 0, %s243
      %s247 = sphi 0, %s246
      %s263 = sphi 0, %s247
      %s267 = sphi 0, %s267
      %s269 = sphi 0, %s267
      %s270 = sphi 0, %s269
      %s284 = sphi 0, %s270
      %s288 = sphi 0, %s288
      %s290 = sphi 0, %s288
      %s291 = sphi 0, %s290
      %s305 = sphi 0, %s291
      %s309 = sphi 0, %s309
      %s311 = sphi 0, %s309
      %s312 = sphi 0, %s311
      %s326 = sphi 0, %s312
    $region4: #{tpu_custom_call.1} parent=1 // loop_header_branch
      %22 = sbr.rel (%p20) target = $region8
    $region5: #{tpu_custom_call.1} parent=1 // loop_body
      %s24 = ssub.s32 %s19, 1
      %s25 = ssub.s32 %s19, 2
      %s26 = sadd.s32 %s19, 1
      %s28 = sadd.s32 %s27, 1
      %p31 = scmp.eq.s32.totalorder %s19, 1
      %p32 = scmp.ne.s32.totalorder %s27, %s29
      %p33 = scmp.eq.s32.totalorder %s19, 0
      %p34 = por %p32, %p33
      %p35 = scmp.ne.s32.totalorder %s27, %s29
      %p36 = scmp.eq.s32.totalorder %s24, 1
      %p37 = por %p35, %p36
      %p38 = scmp.ne.s32.totalorder %s29, %s30
      %p39 = scmp.eq.s32.totalorder %s24, 0
      %p40 = por %p38, %p39
      %p41 = scmp.ne.s32.totalorder %s29, %s30
      %p42 = scmp.eq.s32.totalorder %s25, 1
      %p43 = por %p41, %p42
      %p45 = scmp.ne.s32.totalorder %s30, %s44
      %p46 = scmp.eq.s32.totalorder %s25, 0
      %p47 = por %p45, %p46
      %s49 = sadd.s32 %s48, 1
      %p52 = scmp.eq.s32.totalorder %s19, 1
      %p53 = scmp.ne.s32.totalorder %s48, %s50
      %p54 = scmp.eq.s32.totalorder %s19, 0
      %p55 = por %p53, %p54
      %p56 = scmp.ne.s32.totalorder %s48, %s50
      %p57 = scmp.eq.s32.totalorder %s24, 1
      %p58 = por %p56, %p57
      %p59 = scmp.ne.s32.totalorder %s50, %s51
      %p60 = scmp.eq.s32.totalorder %s24, 0
      %p61 = por %p59, %p60
      %p62 = scmp.ne.s32.totalorder %s50, %s51
      %p63 = scmp.eq.s32.totalorder %s25, 1
      %p64 = por %p62, %p63
      %p66 = scmp.ne.s32.totalorder %s51, %s65
      %p67 = scmp.eq.s32.totalorder %s25, 0
      %p68 = por %p66, %p67
      %s70 = sadd.s32 %s69, 1
      %p73 = scmp.eq.s32.totalorder %s19, 1
      %p74 = scmp.ne.s32.totalorder %s69, %s71
      %p75 = scmp.eq.s32.totalorder %s19, 0
      %p76 = por %p74, %p75
      %p77 = scmp.ne.s32.totalorder %s69, %s71
      %p78 = scmp.eq.s32.totalorder %s24, 1
      %p79 = por %p77, %p78
      %p80 = scmp.ne.s32.totalorder %s71, %s72
      %p81 = scmp.eq.s32.totalorder %s24, 0
      %p82 = por %p80, %p81
      %p83 = scmp.ne.s32.totalorder %s71, %s72
      %p84 = scmp.eq.s32.totalorder %s25, 1
      %p85 = por %p83, %p84
      %p87 = scmp.ne.s32.totalorder %s72, %s86
      %p88 = scmp.eq.s32.totalorder %s25, 0
      %p89 = por %p87, %p88
      %s91 = sadd.s32 %s90, 1
      %p94 = scmp.eq.s32.totalorder %s19, 1
      %p95 = scmp.ne.s32.totalorder %s90, %s92
      %p96 = scmp.eq.s32.totalorder %s19, 0
      %p97 = por %p95, %p96
      %p98 = scmp.ne.s32.totalorder %s90, %s92
      %p99 = scmp.eq.s32.totalorder %s24, 1
      %p100 = por %p98, %p99
      %p101 = scmp.ne.s32.totalorder %s92, %s93
      %p102 = scmp.eq.s32.totalorder %s24, 0
      %p103 = por %p101, %p102
      %p104 = scmp.ne.s32.totalorder %s92, %s93
      %p105 = scmp.eq.s32.totalorder %s25, 1
      %p106 = por %p104, %p105
      %p108 = scmp.ne.s32.totalorder %s93, %s107
      %p109 = scmp.eq.s32.totalorder %s25, 0
      %p110 = por %p108, %p109
      %s111 = ssub.s32 %s19, %s26
      %p112 = scmp.eq.s32.totalorder %s111, 0
      %s114 = sadd.s32 %s113, 1
      %s115 = scalar_select %p112, %s113, %s114
      %p118 = pneg %p112
      %p119 = scmp.eq.s32.totalorder %s19, 1
      %p120 = por %p118, %p119
      %p121 = scmp.ne.s32.totalorder %s113, %s116
      %p122 = scmp.eq.s32.totalorder %s19, 0
      %p123 = por %p121, %p122
      %p124 = scmp.ne.s32.totalorder %s113, %s116
      %p125 = scmp.eq.s32.totalorder %s24, 1
      %p126 = por %p124, %p125
      %p127 = scmp.ne.s32.totalorder %s116, %s117
      %p128 = scmp.eq.s32.totalorder %s24, 0
      %p129 = por %p127, %p128
      %p130 = scmp.ne.s32.totalorder %s116, %s117
      %p131 = scmp.eq.s32.totalorder %s25, 1
      %p132 = por %p130, %p131
      %p134 = scmp.ne.s32.totalorder %s117, %s133
      %p135 = scmp.eq.s32.totalorder %s25, 0
      %p136 = por %p134, %p135
      %s137 = ssub.s32 %s19, %s26
      %p138 = scmp.eq.s32.totalorder %s137, 0
      %s140 = sadd.s32 %s139, 1
      %s141 = scalar_select %p138, %s139, %s140
      %p144 = pneg %p138
      %p145 = scmp.eq.s32.totalorder %s19, 1
      %p146 = por %p144, %p145
      %p147 = scmp.ne.s32.totalorder %s139, %s142
      %p148 = scmp.eq.s32.totalorder %s19, 0
      %p149 = por %p147, %p148
      %p150 = scmp.ne.s32.totalorder %s139, %s142
      %p151 = scmp.eq.s32.totalorder %s24, 1
      %p152 = por %p150, %p151
      %p153 = scmp.ne.s32.totalorder %s142, %s143
      %p154 = scmp.eq.s32.totalorder %s24, 0
      %p155 = por %p153, %p154
      %p156 = scmp.ne.s32.totalorder %s142, %s143
      %p157 = scmp.eq.s32.totalorder %s25, 1
      %p158 = por %p156, %p157
      %p160 = scmp.ne.s32.totalorder %s143, %s159
      %p161 = scmp.eq.s32.totalorder %s25, 0
      %p162 = por %p160, %p161
      %s163 = ssub.s32 %s19, %s26
      %p164 = scmp.eq.s32.totalorder %s163, 0
      %s166 = sadd.s32 %s165, 1
      %s167 = scalar_select %p164, %s165, %s166
      %p170 = pneg %p164
      %p171 = scmp.eq.s32.totalorder %s19, 1
      %p172 = por %p170, %p171
      %p173 = scmp.ne.s32.totalorder %s165, %s168
      %p174 = scmp.eq.s32.totalorder %s19, 0
      %p175 = por %p173, %p174
      %p176 = scmp.ne.s32.totalorder %s165, %s168
      %p177 = scmp.eq.s32.totalorder %s24, 1
      %p178 = por %p176, %p177
      %p179 = scmp.ne.s32.totalorder %s168, %s169
      %p180 = scmp.eq.s32.totalorder %s24, 0
      %p181 = por %p179, %p180
      %p182 = scmp.ne.s32.totalorder %s168, %s169
      %p183 = scmp.eq.s32.totalorder %s25, 1
      %p184 = por %p182, %p183
      %p186 = scmp.ne.s32.totalorder %s169, %s185
      %p187 = scmp.eq.s32.totalorder %s25, 0
      %p188 = por %p186, %p187
      %s189 = ssub.s32 %s19, %s26
      %p190 = scmp.eq.s32.totalorder %s189, 0
      %s192 = sadd.s32 %s191, 1
      %s193 = scalar_select %p190, %s191, %s192
      %p196 = pneg %p190
      %p197 = scmp.eq.s32.totalorder %s19, 1
      %p198 = por %p196, %p197
      %p199 = scmp.ne.s32.totalorder %s191, %s194
      %p200 = scmp.eq.s32.totalorder %s19, 0
      %p201 = por %p199, %p200
      %p202 = scmp.ne.s32.totalorder %s191, %s194
      %p203 = scmp.eq.s32.totalorder %s24, 1
      %p204 = por %p202, %p203
      %p205 = scmp.ne.s32.totalorder %s194, %s195
      %p206 = scmp.eq.s32.totalorder %s24, 0
      %p207 = por %p205, %p206
      %p208 = scmp.ne.s32.totalorder %s194, %s195
      %p209 = scmp.eq.s32.totalorder %s25, 1
      %p210 = por %p208, %p209
      %p212 = scmp.ne.s32.totalorder %s195, %s211
      %p213 = scmp.eq.s32.totalorder %s25, 0
      %p214 = por %p212, %p213
      %s215 = ssub.s32 %s19, %s26
      %p216 = scmp.eq.s32.totalorder %s215, 0
      %s218 = sadd.s32 %s217, 1
      %s219 = scalar_select %p216, %s217, %s218
      %p222 = pneg %p216
      %p223 = scmp.eq.s32.totalorder %s19, 1
      %p224 = por %p222, %p223
      %p225 = scmp.ne.s32.totalorder %s217, %s220
      %p226 = scmp.eq.s32.totalorder %s19, 0
      %p227 = por %p225, %p226
      %p228 = scmp.ne.s32.totalorder %s217, %s220
      %p229 = scmp.eq.s32.totalorder %s24, 1
      %p230 = por %p228, %p229
      %p231 = scmp.ne.s32.totalorder %s220, %s221
      %p232 = scmp.eq.s32.totalorder %s24, 0
      %p233 = por %p231, %p232
      %p234 = scmp.ne.s32.totalorder %s220, %s221
      %p235 = scmp.eq.s32.totalorder %s25, 1
      %p236 = por %p234, %p235
      %p238 = scmp.ne.s32.totalorder %s221, %s237
      %p239 = scmp.eq.s32.totalorder %s25, 0
      %p240 = por %p238, %p239
      %s241 = ssub.s32 %s19, %s26
      %p242 = scmp.eq.s32.totalorder %s241, 0
      %s244 = sadd.s32 %s243, 1
      %s245 = scalar_select %p242, %s243, %s244
      %p248 = pneg %p242
      %p249 = scmp.eq.s32.totalorder %s19, 1
      %p250 = por %p248, %p249
      %p251 = scmp.ne.s32.totalorder %s243, %s246
      %p252 = scmp.eq.s32.totalorder %s19, 0
      %p253 = por %p251, %p252
      %p254 = scmp.ne.s32.totalorder %s243, %s246
      %p255 = scmp.eq.s32.totalorder %s24, 1
      %p256 = por %p254, %p255
      %p257 = scmp.ne.s32.totalorder %s246, %s247
      %p258 = scmp.eq.s32.totalorder %s24, 0
      %p259 = por %p257, %p258
      %p260 = scmp.ne.s32.totalorder %s246, %s247
      %p261 = scmp.eq.s32.totalorder %s25, 1
      %p262 = por %p260, %p261
      %p264 = scmp.ne.s32.totalorder %s247, %s263
      %p265 = scmp.eq.s32.totalorder %s25, 0
      %p266 = por %p264, %p265
      %s268 = sadd.s32 %s267, 1
      %p271 = scmp.eq.s32.totalorder %s19, 1
      %p272 = scmp.ne.s32.totalorder %s267, %s269
      %p273 = scmp.eq.s32.totalorder %s19, 0
      %p274 = por %p272, %p273
      %p275 = scmp.ne.s32.totalorder %s267, %s269
      %p276 = scmp.eq.s32.totalorder %s24, 1
      %p277 = por %p275, %p276
      %p278 = scmp.ne.s32.totalorder %s269, %s270
      %p279 = scmp.eq.s32.totalorder %s24, 0
      %p280 = por %p278, %p279
      %p281 = scmp.ne.s32.totalorder %s269, %s270
      %p282 = scmp.eq.s32.totalorder %s25, 1
      %p283 = por %p281, %p282
      %p285 = scmp.ne.s32.totalorder %s270, %s284
      %p286 = scmp.eq.s32.totalorder %s25, 0
      %p287 = por %p285, %p286
      %s289 = sadd.s32 %s288, 1
      %p292 = scmp.eq.s32.totalorder %s19, 1
      %p293 = scmp.ne.s32.totalorder %s288, %s290
      %p294 = scmp.eq.s32.totalorder %s19, 0
      %p295 = por %p293, %p294
      %p296 = scmp.ne.s32.totalorder %s288, %s290
      %p297 = scmp.eq.s32.totalorder %s24, 1
      %p298 = por %p296, %p297
      %p299 = scmp.ne.s32.totalorder %s290, %s291
      %p300 = scmp.eq.s32.totalorder %s24, 0
      %p301 = por %p299, %p300
      %p302 = scmp.ne.s32.totalorder %s290, %s291
      %p303 = scmp.eq.s32.totalorder %s25, 1
      %p304 = por %p302, %p303
      %p306 = scmp.ne.s32.totalorder %s291, %s305
      %p307 = scmp.eq.s32.totalorder %s25, 0
      %p308 = por %p306, %p307
      %s310 = sadd.s32 %s309, 1
      %p313 = scmp.eq.s32.totalorder %s19, 1
      %p314 = scmp.ne.s32.totalorder %s309, %s311
      %p315 = scmp.eq.s32.totalorder %s19, 0
      %p316 = por %p314, %p315
      %p317 = scmp.ne.s32.totalorder %s309, %s311
      %p318 = scmp.eq.s32.totalorder %s24, 1
      %p319 = por %p317, %p318
      %p320 = scmp.ne.s32.totalorder %s311, %s312
      %p321 = scmp.eq.s32.totalorder %s24, 0
      %p322 = por %p320, %p321
      %p323 = scmp.ne.s32.totalorder %s311, %s312
      %p324 = scmp.eq.s32.totalorder %s25, 1
      %p325 = por %p323, %p324
      %p327 = scmp.ne.s32.totalorder %s312, %s326
      %p328 = scmp.eq.s32.totalorder %s25, 0
      %p329 = por %p327, %p328
      %p330 = scmp.le.s32.totalorder 1, %s19
      %p331 = scmp.lt.s32.totalorder %s19, 3
      %p332 = pnand %p330, %p331
      %p333 = pneg %p332
      // Predicated region
      $region9: #{tpu_custom_call.1} parent=5 // pred_check
        _
      $region10: #{tpu_custom_call.1} parent=5 // pred_check_branch
        %335 = sbr.rel (%p332) target = $region12
      $region11: #{tpu_custom_call.1} parent=5 // pred_region
        %s336 = ssub.s32 %s19, 1
        // Predicated region
        $region13: #{tpu_custom_call.1} parent=11 // pred_check
          %p337 = pneg %p40
        $region14: #{tpu_custom_call.1} parent=11 // pred_check_branch
          %339 = sbr.rel (%p337) target = $region16
        $region15: #{tpu_custom_call.1} parent=11 // pred_region
          _
        $region16: #{tpu_custom_call.1} parent=11 // pred_fallthru
          _
        // Predicated region
        $region17: #{tpu_custom_call.1} parent=11 // pred_check
          %p340 = pneg %p61
        $region18: #{tpu_custom_call.1} parent=11 // pred_check_branch
          %342 = sbr.rel (%p340) target = $region20
        $region19: #{tpu_custom_call.1} parent=11 // pred_region
          _
        $region20: #{tpu_custom_call.1} parent=11 // pred_fallthru
          _
        // Predicated region
        $region21: #{tpu_custom_call.1} parent=11 // pred_check
          %p343 = pneg %p82
        $region22: #{tpu_custom_call.1} parent=11 // pred_check_branch
          %345 = sbr.rel (%p343) target = $region24
        $region23: #{tpu_custom_call.1} parent=11 // pred_region
          _
        $region24: #{tpu_custom_call.1} parent=11 // pred_fallthru
          _
        // Predicated region
        $region25: #{tpu_custom_call.1} parent=11 // pred_check
          %p346 = pneg %p103
        $region26: #{tpu_custom_call.1} parent=11 // pred_check_branch
          %348 = sbr.rel (%p346) target = $region28
        $region27: #{tpu_custom_call.1} parent=11 // pred_region
          _
        $region28: #{tpu_custom_call.1} parent=11 // pred_fallthru
          _
        // Predicated region
        $region29: #{tpu_custom_call.1} parent=11 // pred_check
          %p349 = pneg %p280
        $region30: #{tpu_custom_call.1} parent=11 // pred_check_branch
          %351 = sbr.rel (%p349) target = $region32
        $region31: #{tpu_custom_call.1} parent=11 // pred_region
          _
        $region32: #{tpu_custom_call.1} parent=11 // pred_fallthru
          _
        // Predicated region
        $region33: #{tpu_custom_call.1} parent=11 // pred_check
          %p352 = pneg %p301
        $region34: #{tpu_custom_call.1} parent=11 // pred_check_branch
          %354 = sbr.rel (%p352) target = $region36
        $region35: #{tpu_custom_call.1} parent=11 // pred_region
          _
        $region36: #{tpu_custom_call.1} parent=11 // pred_fallthru
          _
      $region12: #{tpu_custom_call.1} parent=5 // pred_fallthru
        _
      %p355 = scmp.lt.s32.totalorder %s19, 2
      // Predicated region
      $region37: #{tpu_custom_call.1} parent=5 // pred_check
        %p356 = pneg %p355
      $region38: #{tpu_custom_call.1} parent=5 // pred_check_branch
        %358 = sbr.rel (%p356) target = $region40
      $region39: #{tpu_custom_call.1} parent=5 // pred_region
        // Predicated region
        $region41: #{tpu_custom_call.1} parent=39 // pred_check
          %p359 = pneg %p123
        $region42: #{tpu_custom_call.1} parent=39 // pred_check_branch
          %361 = sbr.rel (%p359) target = $region44
        $region43: #{tpu_custom_call.1} parent=39 // pred_region
          %p362 = scmp.lt.s32.totalorder %s19, 1
          %s363 = scalar_select %p362, %s19, 1
          %s364 = scalar_lea.vmem %s4, %s363
        $region44: #{tpu_custom_call.1} parent=39 // pred_fallthru
          _
        // Predicated region
        $region45: #{tpu_custom_call.1} parent=39 // pred_check
          %p365 = pneg %p149
        $region46: #{tpu_custom_call.1} parent=39 // pred_check_branch
          %367 = sbr.rel (%p365) target = $region48
        $region47: #{tpu_custom_call.1} parent=39 // pred_region
          %p368 = scmp.lt.s32.totalorder %s19, 1
          %s369 = scalar_select %p368, %s19, 1
          %s370 = smul.addr %s369, 4
          %s371 = smul.addr %s370, 4
          %s372 = scalar_lea.vmem %s5, %s371
        $region48: #{tpu_custom_call.1} parent=39 // pred_fallthru
          _
        // Predicated region
        $region49: #{tpu_custom_call.1} parent=39 // pred_check
          %p373 = pneg %p175
        $region50: #{tpu_custom_call.1} parent=39 // pred_check_branch
          %375 = sbr.rel (%p373) target = $region52
        $region51: #{tpu_custom_call.1} parent=39 // pred_region
          %p376 = scmp.lt.s32.totalorder %s19, 1
          %s377 = scalar_select %p376, %s19, 1
          %s378 = smul.addr %s377, 8
          %s379 = smul.addr %s378, 4
          %s380 = scalar_lea.vmem %s6, %s379
        $region52: #{tpu_custom_call.1} parent=39 // pred_fallthru
          _
        // Predicated region
        $region53: #{tpu_custom_call.1} parent=39 // pred_check
          %p381 = pneg %p201
        $region54: #{tpu_custom_call.1} parent=39 // pred_check_branch
          %383 = sbr.rel (%p381) target = $region56
        $region55: #{tpu_custom_call.1} parent=39 // pred_region
          %p384 = scmp.lt.s32.totalorder %s19, 1
          %s385 = scalar_select %p384, %s19, 1
          %s386 = scalar_lea.vmem %s7, %s385
        $region56: #{tpu_custom_call.1} parent=39 // pred_fallthru
          _
        // Predicated region
        $region57: #{tpu_custom_call.1} parent=39 // pred_check
          %p387 = pneg %p227
        $region58: #{tpu_custom_call.1} parent=39 // pred_check_branch
          %389 = sbr.rel (%p387) target = $region60
        $region59: #{tpu_custom_call.1} parent=39 // pred_region
          %p390 = scmp.lt.s32.totalorder %s19, 1
          %s391 = scalar_select %p390, %s19, 1
          %s392 = smul.addr %s391, 4
          %s393 = smul.addr %s392, 4
          %s394 = scalar_lea.vmem %s8, %s393
        $region60: #{tpu_custom_call.1} parent=39 // pred_fallthru
          _
        // Predicated region
        $region61: #{tpu_custom_call.1} parent=39 // pred_check
          %p395 = pneg %p253
        $region62: #{tpu_custom_call.1} parent=39 // pred_check_branch
          %397 = sbr.rel (%p395) target = $region64
        $region63: #{tpu_custom_call.1} parent=39 // pred_region
          %p398 = scmp.lt.s32.totalorder %s19, 1
          %s399 = scalar_select %p398, %s19, 1
          %s400 = smul.addr %s399, 8
          %s401 = smul.addr %s400, 4
          %s402 = scalar_lea.vmem %s9, %s401
        $region64: #{tpu_custom_call.1} parent=39 // pred_fallthru
          _
      $region40: #{tpu_custom_call.1} parent=5 // pred_fallthru
        _
      %p403 = scmp.le.s32.totalorder 1, %s19
      %p404 = scmp.lt.s32.totalorder %s19, 3
      %p405 = pnand %p403, %p404
      %p406 = pneg %p405
      // Predicated region
      $region65: #{tpu_custom_call.1} parent=5 // pred_check
        _
      $region66: #{tpu_custom_call.1} parent=5 // pred_check_branch
        %408 = sbr.rel (%p405) target = $region68
      $region67: #{tpu_custom_call.1} parent=5 // pred_region
        %s409 = ssub.s32 %s19, 1
        %p410 = pneg %p40
        %p411 = pneg %p37
        %p412 = pneg %p61
        %p413 = pneg %p58
        %p414 = pneg %p82
        %p415 = pneg %p79
        %p416 = pneg %p103
        %p417 = pneg %p100
        %p418 = scmp.lt.s32.totalorder %s24, 1
        %s419 = scalar_select %p418, %s24, 1
        %s420 = scalar_lea.vmem %s4, %s419
        %p421 = pneg %p129
        %p422 = pneg %p126
        %p423 = scmp.lt.s32.totalorder %s24, 1
        %s424 = scalar_select %p423, %s24, 1
        %s425 = smul.addr %s424, 4
        %s426 = smul.addr %s425, 4
        %s427 = scalar_lea.vmem %s5, %s426
        %p428 = pneg %p155
        %p429 = pneg %p152
        %p430 = scmp.lt.s32.totalorder %s24, 1
        %s431 = scalar_select %p430, %s24, 1
        %s432 = smul.addr %s431, 8
        %s433 = smul.addr %s432, 4
        %s434 = scalar_lea.vmem %s6, %s433
        %p435 = pneg %p181
        %p436 = pneg %p178
        %p437 = scmp.lt.s32.totalorder %s24, 1
        %s438 = scalar_select %p437, %s24, 1
        %s439 = scalar_lea.vmem %s7, %s438
        %p440 = pneg %p207
        %p441 = pneg %p204
        %p442 = scmp.lt.s32.totalorder %s24, 1
        %s443 = scalar_select %p442, %s24, 1
        %s444 = smul.addr %s443, 4
        %s445 = smul.addr %s444, 4
        %s446 = scalar_lea.vmem %s8, %s445
        %p447 = pneg %p233
        %p448 = pneg %p230
        %p449 = scmp.lt.s32.totalorder %s24, 1
        %s450 = scalar_select %p449, %s24, 1
        %s451 = smul.addr %s450, 8
        %s452 = smul.addr %s451, 4
        %s453 = scalar_lea.vmem %s9, %s452
        %p454 = pneg %p259
        %p455 = pneg %p256
        %p456 = pneg %p280
        %p457 = pneg %p277
        %p458 = pneg %p301
        %p459 = pneg %p298
        %p460 = pneg %p322
        %p461 = pneg %p319
        %p462 = scmp.lt.s32.totalorder %s24, 1
        %s463 = scalar_select %p462, %s24, 1
        %s464 = scalar_lea.vmem %s4, %s463
        %p465 = scmp.lt.s32.totalorder %s24, 1
        %s466 = scalar_select %p465, %s24, 1
        %s467 = smul.addr %s466, 4
        %s468 = smul.addr %s467, 4
        %s469 = scalar_lea.vmem %s5, %s468
        %p470 = scmp.lt.s32.totalorder %s24, 1
        %s471 = scalar_select %p470, %s24, 1
        %s472 = smul.addr %s471, 8
        %s473 = smul.addr %s472, 4
        %s474 = scalar_lea.vmem %s6, %s473
        %p475 = scmp.lt.s32.totalorder %s24, 1
        %s476 = scalar_select %p475, %s24, 1
        %s477 = scalar_lea.vmem %s7, %s476
        %p478 = scmp.lt.s32.totalorder %s24, 1
        %s479 = scalar_select %p478, %s24, 1
        %s480 = smul.addr %s479, 4
        %s481 = smul.addr %s480, 4
        %s482 = scalar_lea.vmem %s8, %s481
        %p483 = scmp.lt.s32.totalorder %s24, 1
        %s484 = scalar_select %p483, %s24, 1
        %s485 = smul.addr %s484, 8
        %s486 = smul.addr %s485, 4
        %s487 = scalar_lea.vmem %s9, %s486
        %p489 = scmp.eq.s32.totalorder %s24, 0
        // Predicated region
        $region69: #{tpu_custom_call.1} parent=67 // pred_check
          %p490 = pneg %p489
        $region70: #{tpu_custom_call.1} parent=67 // pred_check_branch
          %492 = sbr.rel (%p490) target = $region72
        $region71: #{tpu_custom_call.1} parent=67 // pred_region
          %v493 = vld [vmem:[%s0] sm:$0xff]
          %v494 = vld [vmem:[%s0 + $0x8] sm:$0xff]
          %v495 = vmul.f32 %v493, 5.656854
          %v496 = vmul.f32 %v494, 5.656854
          %vm497 = vcmask 261120
          %498 = vst.msk [vmem:[#allocation2] sm:$0xff] %vm497, %v495
          %499 = vst.msk [vmem:[#allocation2 + $0x8] sm:$0xff] %vm497, %v496
        $region72: #{tpu_custom_call.1} parent=67 // pred_fallthru
          _
        %v500 = vld [vmem:[#allocation2] sm:$0xff]
        %v501 = vld [vmem:[#allocation2 + $0x8] sm:$0xff]
        %v502 = vld [vmem:[%s1] sm:$0xff]
        %v503 = vld [vmem:[%s1 + $0x8] sm:$0xff]
        %v504 = vld [vmem:[%s2] sm:$0xff]
        %v505 = vld [vmem:[%s2 + $0x8] sm:$0xff]
        %v506 = vld [vmem:[%s464] sm:$0x1]
        %v507 = vmul.f32 %v500, %v500
        %v508 = vmul.f32 %v501, %v501
        %vm509 = vcmask 261120
        %v510 = vsel %vm509, %v507, 0.0
        %511 = vadd.xlane.f32.xlu0 %v510
        %v512 = vpop.xlane.xlu0 %511
        %v513 = vsel %vm509, %v508, 0.0
        %514 = vadd.xlane.f32.xlu0 %v513
        %v515 = vpop.xlane.xlu0 %514
        %v516 = vrcp.pop 32.0
        %v517 = vmul.f32 %v512, %v516
        %v518 = vmul.f32 %v515, %v516
        %v519 = vadd.f32 %v517, 1e-06
        %v520 = vadd.f32 %v518, 1e-06
        %v521 = vrsqrt.pop %v519
        %v522 = vrsqrt.pop %v520
        %v523 = vmul.f32 %v500, %v521
        %v524 = vmul.f32 %v501, %v522
        %v526 = vlaneseq
        %v527 = vshrl.u32 %v526, 7
        %v528 = vsub.s32 0, %v527
        %v529 = vrot.slane %v506, %v528
        %v531 = vmul.f32 %v523, %v529
        %v532 = vmul.f32 %v524, %v529
        %v533 = vpack.c.bf16 %v532, %v531
        %v534 = vld [vmem:[%s469] sm:$0xf]
        %v535 = vld [vmem:[%s469 + $0x4] sm:$0xf]
        %v536 = vld [vmem:[%s469 + $0x8] sm:$0xf]
        %v537 = vld [vmem:[%s469 + $0xc] sm:$0xf]
        %v542 = vunpack.c.l.b16 %v534
        %v543 = vunpack.c.l.b16 %v535
        %v544 = vunpack.c.l.b16 %v536
        %v545 = vunpack.c.l.b16 %v537
        %v546 = vpack.c.b16 %v543, %v542
        %v547 = vpack.c.b16 %v545, %v544
        %v551 = vsel %vm509, %v533, 0
        %553 = vmatprep.subr.bf16.mxu0 0
        %554 = vmatpush1.bf16.msra.mxu0 %v546
        %555 = vmatprep.subr.bf16.mxu0 0
        %556 = vmatpush1.bf16.msra.mxu0 %v547
        %557 = vmatprep.subr.bf16.mxu0 0
        %558 = vmatpush1.bf16.msra.mxu0 0
        %559 = vmatprep.subr.bf16.mxu0 0
        %560 = vmatpush1.bf16.msra.mxu0 0
        %561 = vmatprep.subr.bf16.mxu0 0
        %562 = vmatpush1.bf16.msra.mxu0 0
        %563 = vmatprep.subr.bf16.mxu0 0
        %564 = vmatpush1.bf16.msra.mxu0 0
        %565 = vmatprep.subr.bf16.mxu0 0
        %566 = vmatpush1.bf16.msra.mxu0 0
        %567 = vmatprep.subr.bf16.mxu0 0
        %568 = vmatpush1.bf16.msra.mxu0 0
        %569 = vmatprep.subr.bf16.mxu0 0
        %570 = vmatpush1.bf16.msra.mxu0 0
        %571 = vmatprep.subr.bf16.mxu0 0
        %572 = vmatpush1.bf16.msra.mxu0 0
        %573 = vmatprep.subr.bf16.mxu0 0
        %574 = vmatpush1.bf16.msra.mxu0 0
        %575 = vmatprep.subr.bf16.mxu0 0
        %576 = vmatpush1.bf16.msra.mxu0 0
        %577 = vmatprep.subr.bf16.mxu0 0
        %578 = vmatpush1.bf16.msra.mxu0 0
        %579 = vmatprep.subr.bf16.mxu0 0
        %580 = vmatpush1.bf16.msra.mxu0 0
        %581 = vmatprep.subr.bf16.mxu0 0
        %582 = vmatpush1.bf16.msra.mxu0 0
        %583 = vmatprep.subr.bf16.mxu0 0
        %584 = vmatpush1.bf16.msra.mxu0 0
        %585 = vmatprep.mubr.bf16.mxu0 0
        %586 = vmatmul.mubr.bf16.gmra.mrb[0].mxu0 %v551
        %v587 = vpop.f32.mrb[0].mxu0
        %v588 = vadd.f32 0.0, %v587
        %v589 = vpop.f32.mrb[0].mxu0
        %v590 = vpop.f32.mrb[0].mxu0
        %v591 = vadd.f32 0.0, %v590
        %v592 = vpop.f32.mrb[0].mxu0
        %593 = vdwg.mxu0
        %v594 = vsub.f32 0.0, %v588
        %v595 = vsub.f32 0.0, %v591
        %598 = vrot.lane.b32.xlu0 %v594, 120
        %v599 = vpop.permute.xlu0 %598
        %600 = vrot.lane.b32.xlu0 %v595, 120
        %v601 = vpop.permute.xlu0 %600
        %606 = vrot.lane.b32.xlu0 %v588, 8
        %v607 = vpop.permute.xlu0 %606
        %608 = vrot.lane.b32.xlu0 %v591, 8
        %v609 = vpop.permute.xlu0 %608
        %vm612 = vcmask 64512
        %v613 = vsel %vm612, %v599, %v607
        %v614 = vsel %vm612, %v601, %v609
        %v615 = vmul.f32 %v588, %v502
        %v616 = vmul.f32 %v591, %v503
        %v617 = vmul.f32 %v613, %v504
        %v618 = vmul.f32 %v614, %v505
        %v619 = vadd.f32 %v615, %v617
        %v620 = vadd.f32 %v616, %v618
        %621 = vrot.lane.b32.xlu0 %v594, 104
        %v622 = vpop.permute.xlu0 %621
        %623 = vrot.lane.b32.xlu0 %v595, 104
        %v624 = vpop.permute.xlu0 %623
        %627 = vrot.lane.b32.xlu0 %v588, 120
        %v628 = vpop.permute.xlu0 %627
        %629 = vrot.lane.b32.xlu0 %v591, 120
        %v630 = vpop.permute.xlu0 %629
        %v633 = vsel %vm612, %v622, %v628
        %v634 = vsel %vm612, %v624, %v630
        %637 = vrot.lane.b32.xlu0 %v502, 16
        %v638 = vpop.permute.xlu0 %637
        %639 = vrot.lane.b32.xlu0 %v503, 16
        %v640 = vpop.permute.xlu0 %639
        %v643 = vmul.f32 %v588, %v638
        %v644 = vmul.f32 %v591, %v640
        %v645 = vmul.f32 %v633, %v504
        %v646 = vmul.f32 %v634, %v505
        %649 = vrot.lane.b32.xlu0 %v645, 16
        %v650 = vpop.permute.xlu0 %649
        %651 = vrot.lane.b32.xlu0 %v646, 16
        %v652 = vpop.permute.xlu0 %651
        %v655 = vadd.f32 %v643, %v650
        %v656 = vadd.f32 %v644, %v652
        %657 = vrot.lane.b32.xlu0 %v594, 88
        %v658 = vpop.permute.xlu0 %657
        %659 = vrot.lane.b32.xlu0 %v595, 88
        %v660 = vpop.permute.xlu0 %659
        %663 = vrot.lane.b32.xlu0 %v588, 104
        %v664 = vpop.permute.xlu0 %663
        %665 = vrot.lane.b32.xlu0 %v591, 104
        %v666 = vpop.permute.xlu0 %665
        %v669 = vsel %vm612, %v658, %v664
        %v670 = vsel %vm612, %v660, %v666
        %671 = vrot.lane.b32.xlu0 %v502, 32
        %v672 = vpop.permute.xlu0 %671
        %673 = vrot.lane.b32.xlu0 %v503, 32
        %v674 = vpop.permute.xlu0 %673
        %v677 = vmul.f32 %v588, %v672
        %v678 = vmul.f32 %v591, %v674
        %v679 = vmul.f32 %v669, %v504
        %v680 = vmul.f32 %v670, %v505
        %683 = vrot.lane.b32.xlu0 %v679, 32
        %v684 = vpop.permute.xlu0 %683
        %685 = vrot.lane.b32.xlu0 %v680, 32
        %v686 = vpop.permute.xlu0 %685
        %v689 = vadd.f32 %v677, %v684
        %v690 = vadd.f32 %v678, %v686
        %691 = vrot.lane.b32.xlu0 %v594, 72
        %v692 = vpop.permute.xlu0 %691
        %693 = vrot.lane.b32.xlu0 %v595, 72
        %v694 = vpop.permute.xlu0 %693
        %697 = vrot.lane.b32.xlu0 %v588, 88
        %v698 = vpop.permute.xlu0 %697
        %699 = vrot.lane.b32.xlu0 %v591, 88
        %v700 = vpop.permute.xlu0 %699
        %v703 = vsel %vm612, %v692, %v698
        %v704 = vsel %vm612, %v694, %v700
        %705 = vrot.lane.b32.xlu0 %v502, 48
        %v706 = vpop.permute.xlu0 %705
        %707 = vrot.lane.b32.xlu0 %v503, 48
        %v708 = vpop.permute.xlu0 %707
        %v711 = vmul.f32 %v588, %v706
        %v712 = vmul.f32 %v591, %v708
        %v713 = vmul.f32 %v703, %v504
        %v714 = vmul.f32 %v704, %v505
        %717 = vrot.lane.b32.xlu0 %v713, 48
        %v718 = vpop.permute.xlu0 %717
        %719 = vrot.lane.b32.xlu0 %v714, 48
        %v720 = vpop.permute.xlu0 %719
        %v723 = vadd.f32 %v711, %v718
        %v724 = vadd.f32 %v712, %v720
        %vm725 = vcmask 130048
        %v726 = vsel %vm725, %v619, %v655
        %v727 = vsel %vm725, %v620, %v656
        %v728 = vsel %vm509, %v726, %v689
        %v729 = vsel %vm509, %v727, %v690
        %vm730 = vcmask 392192
        %v731 = vsel %vm730, %v728, %v723
        %v732 = vsel %vm730, %v729, %v724
        %733 = vrot.lane.b32.xlu0 %v594, 56
        %v734 = vpop.permute.xlu0 %733
        %735 = vrot.lane.b32.xlu0 %v595, 56
        %v736 = vpop.permute.xlu0 %735
        %739 = vrot.lane.b32.xlu0 %v588, 72
        %v740 = vpop.permute.xlu0 %739
        %741 = vrot.lane.b32.xlu0 %v591, 72
        %v742 = vpop.permute.xlu0 %741
        %v745 = vsel %vm612, %v734, %v740
        %v746 = vsel %vm612, %v736, %v742
        %747 = vrot.lane.b32.xlu0 %v502, 64
        %v748 = vpop.permute.xlu0 %747
        %749 = vrot.lane.b32.xlu0 %v503, 64
        %v750 = vpop.permute.xlu0 %749
        %v753 = vmul.f32 %v588, %v748
        %v754 = vmul.f32 %v591, %v750
        %v755 = vmul.f32 %v745, %v504
        %v756 = vmul.f32 %v746, %v505
        %759 = vrot.lane.b32.xlu0 %v755, 64
        %v760 = vpop.permute.xlu0 %759
        %761 = vrot.lane.b32.xlu0 %v756, 64
        %v762 = vpop.permute.xlu0 %761
        %v765 = vadd.f32 %v753, %v760
        %v766 = vadd.f32 %v754, %v762
        %767 = vrot.lane.b32.xlu0 %v594, 40
        %v768 = vpop.permute.xlu0 %767
        %769 = vrot.lane.b32.xlu0 %v595, 40
        %v770 = vpop.permute.xlu0 %769
        %773 = vrot.lane.b32.xlu0 %v588, 56
        %v774 = vpop.permute.xlu0 %773
        %775 = vrot.lane.b32.xlu0 %v591, 56
        %v776 = vpop.permute.xlu0 %775
        %v779 = vsel %vm612, %v768, %v774
        %v780 = vsel %vm612, %v770, %v776
        %781 = vrot.lane.b32.xlu0 %v502, 80
        %v782 = vpop.permute.xlu0 %781
        %783 = vrot.lane.b32.xlu0 %v503, 80
        %v784 = vpop.permute.xlu0 %783
        %v787 = vmul.f32 %v588, %v782
        %v788 = vmul.f32 %v591, %v784
        %v789 = vmul.f32 %v779, %v504
        %v790 = vmul.f32 %v780, %v505
        %793 = vrot.lane.b32.xlu0 %v789, 80
        %v794 = vpop.permute.xlu0 %793
        %795 = vrot.lane.b32.xlu0 %v790, 80
        %v796 = vpop.permute.xlu0 %795
        %v799 = vadd.f32 %v787, %v794
        %v800 = vadd.f32 %v788, %v796
        %803 = vrot.lane.b32.xlu0 %v765, 64
        %v804 = vpop.permute.xlu0 %803
        %805 = vrot.lane.b32.xlu0 %v766, 64
        %v806 = vpop.permute.xlu0 %805
        %811 = vrot.lane.b32.xlu0 %v799, 64
        %v812 = vpop.permute.xlu0 %811
        %813 = vrot.lane.b32.xlu0 %v800, 64
        %v814 = vpop.permute.xlu0 %813
        %v817 = vsel %vm725, %v804, %v812
        %v818 = vsel %vm725, %v806, %v814
        %v819 = vld [vmem:[%s3] sm:$0xff]
        %v820 = vpack.c.bf16 %v731, %v731
        %v821 = vpack.c.bf16 %v817, %v817
        %v823 = vsel %vm725, %v820, 0
        %v826 = vsel %vm725, %v821, 0
        %828 = vmatprep.subr.bf16.mxu0 0
        %829 = vmatpush1.bf16.xpose.msra.mxu0 %v826
        %830 = vmatprep.subr.bf16.mxu0 0
        %831 = vmatpush1.bf16.xpose.msra.mxu0 0
        %832 = vmatprep.subr.bf16.mxu0 0
        %833 = vmatpush1.bf16.xpose.msra.mxu0 0
        %834 = vmatprep.subr.bf16.mxu0 0
        %835 = vmatpush1.bf16.xpose.msra.mxu0 0
        %836 = vmatprep.subr.bf16.mxu0 0
        %837 = vmatpush1.bf16.xpose.msra.mxu0 0
        %838 = vmatprep.subr.bf16.mxu0 0
        %839 = vmatpush1.bf16.xpose.msra.mxu0 0
        %840 = vmatprep.subr.bf16.mxu0 0
        %841 = vmatpush1.bf16.xpose.msra.mxu0 0
        %842 = vmatprep.subr.bf16.mxu0 0
        %843 = vmatpush1.bf16.xpose.msra.mxu0 0
        %844 = vmatprep.subr.bf16.mxu0 0
        %845 = vmatpush1.bf16.xpose.msra.mxu0 0
        %846 = vmatprep.subr.bf16.mxu0 0
        %847 = vmatpush1.bf16.xpose.msra.mxu0 0
        %848 = vmatprep.subr.bf16.mxu0 0
        %849 = vmatpush1.bf16.xpose.msra.mxu0 0
        %850 = vmatprep.subr.bf16.mxu0 0
        %851 = vmatpush1.bf16.xpose.msra.mxu0 0
        %852 = vmatprep.subr.bf16.mxu0 0
        %853 = vmatpush1.bf16.xpose.msra.mxu0 0
        %854 = vmatprep.subr.bf16.mxu0 0
        %855 = vmatpush1.bf16.xpose.msra.mxu0 0
        %856 = vmatprep.subr.bf16.mxu0 0
        %857 = vmatpush1.bf16.xpose.msra.mxu0 0
        %858 = vmatprep.subr.bf16.mxu0 0
        %859 = vmatpush1.bf16.xpose.msra.mxu0 0
        %860 = vmatprep.mubr.bf16.mxu0 0
        %861 = vmatmul.mubr.bf16.gmra.mrb[0].mxu0 %v823
        %v862 = vpop.f32.mrb[0].mxu0
        %v863 = vadd.f32 0.0, %v862
        %v864 = vpop.f32.mrb[0].mxu0
        %v865 = vpop.f32.mrb[0].mxu0
        %v866 = vpop.f32.mrb[0].mxu0
        %867 = vdwg.mxu0
        %v868 = vmul.f32 %v863, 0.25
        %v869 = vadd.f32 %v868, %v819
        %v870 = vsel %vm612, %v869, -inf
        %871 = vmax.xlane.f32.xlu0 %v870
        %v872 = vpop.xlane.xlu0 %871
        %v873 = vsub.f32 %v869, %v872
        %v874 = vmul.f32 %v873, 1.442695
        %v875 = vpow.pop %v874
        %v876 = vsel %vm612, %v875, 0.0
        %877 = vadd.xlane.f32.xlu0 %v876
        %v878 = vpop.xlane.xlu0 %877
        %v879 = vrcp.pop %v878
        %v880 = vmul.f32 %v875, %v879
        %v881 = vpack.c.bf16 %v880, %v880
        %v882 = vpack.c.bf16 %v588, %v588
        %884 = vrot.lane.b32.xlu0 %v882, 32
        %v885 = vpop.permute.xlu0 %884
        %v887 = vsel %vm612, %v881, 0
        %vm889 = vcmask 1043456
        %v891 = vsel %vm889, %v885, 0
        %893 = vmatprep.subr.bf16.mxu0 0
        %894 = vmatpush1.bf16.msra.mxu0 %v891
        %895 = vmatprep.subr.bf16.mxu0 0
        %896 = vmatpush1.bf16.msra.mxu0 0
        %897 = vmatprep.subr.bf16.mxu0 0
        %898 = vmatpush1.bf16.msra.mxu0 0
        %899 = vmatprep.subr.bf16.mxu0 0
        %900 = vmatpush1.bf16.msra.mxu0 0
        %901 = vmatprep.subr.bf16.mxu0 0
        %902 = vmatpush1.bf16.msra.mxu0 0
        %903 = vmatprep.subr.bf16.mxu0 0
        %904 = vmatpush1.bf16.msra.mxu0 0
        %905 = vmatprep.subr.bf16.mxu0 0
        %906 = vmatpush1.bf16.msra.mxu0 0
        %907 = vmatprep.subr.bf16.mxu0 0
        %908 = vmatpush1.bf16.msra.mxu0 0
        %909 = vmatprep.subr.bf16.mxu0 0
        %910 = vmatpush1.bf16.msra.mxu0 0
        %911 = vmatprep.subr.bf16.mxu0 0
        %912 = vmatpush1.bf16.msra.mxu0 0
        %913 = vmatprep.subr.bf16.mxu0 0
        %914 = vmatpush1.bf16.msra.mxu0 0
        %915 = vmatprep.subr.bf16.mxu0 0
        %916 = vmatpush1.bf16.msra.mxu0 0
        %917 = vmatprep.subr.bf16.mxu0 0
        %918 = vmatpush1.bf16.msra.mxu0 0
        %919 = vmatprep.subr.bf16.mxu0 0
        %920 = vmatpush1.bf16.msra.mxu0 0
        %921 = vmatprep.subr.bf16.mxu0 0
        %922 = vmatpush1.bf16.msra.mxu0 0
        %923 = vmatprep.subr.bf16.mxu0 0
        %924 = vmatpush1.bf16.msra.mxu0 0
        %925 = vmatprep.mubr.bf16.mxu0 0
        %926 = vmatmul.mubr.bf16.gmra.mrb[0].mxu0 %v887
        %v927 = vpop.f32.mrb[0].mxu0
        %v928 = vadd.f32 0.0, %v927
        %v929 = vpop.f32.mrb[0].mxu0
        %v930 = vpop.f32.mrb[0].mxu0
        %v931 = vpop.f32.mrb[0].mxu0
        %932 = vdwg.mxu0
        %934 = vrot.lane.b32.xlu0 %v820, 112
        %v935 = vpop.permute.xlu0 %934
        %v937 = vsel %vm725, %v935, 0
        %939 = vmatprep.subr.bf16.mxu0 0
        %940 = vmatpush1.bf16.xpose.msra.mxu0 %v826
        %941 = vmatprep.subr.bf16.mxu0 0
        %942 = vmatpush1.bf16.xpose.msra.mxu0 0
        %943 = vmatprep.subr.bf16.mxu0 0
        %944 = vmatpush1.bf16.xpose.msra.mxu0 0
        %945 = vmatprep.subr.bf16.mxu0 0
        %946 = vmatpush1.bf16.xpose.msra.mxu0 0
        %947 = vmatprep.subr.bf16.mxu0 0
        %948 = vmatpush1.bf16.xpose.msra.mxu0 0
        %949 = vmatprep.subr.bf16.mxu0 0
        %950 = vmatpush1.bf16.xpose.msra.mxu0 0
        %951 = vmatprep.subr.bf16.mxu0 0
        %952 = vmatpush1.bf16.xpose.msra.mxu0 0
        %953 = vmatprep.subr.bf16.mxu0 0
        %954 = vmatpush1.bf16.xpose.msra.mxu0 0
        %955 = vmatprep.subr.bf16.mxu0 0
        %956 = vmatpush1.bf16.xpose.msra.mxu0 0
        %957 = vmatprep.subr.bf16.mxu0 0
        %958 = vmatpush1.bf16.xpose.msra.mxu0 0
        %959 = vmatprep.subr.bf16.mxu0 0
        %960 = vmatpush1.bf16.xpose.msra.mxu0 0
        %961 = vmatprep.subr.bf16.mxu0 0
        %962 = vmatpush1.bf16.xpose.msra.mxu0 0
        %963 = vmatprep.subr.bf16.mxu0 0
        %964 = vmatpush1.bf16.xpose.msra.mxu0 0
        %965 = vmatprep.subr.bf16.mxu0 0
        %966 = vmatpush1.bf16.xpose.msra.mxu0 0
        %967 = vmatprep.subr.bf16.mxu0 0
        %968 = vmatpush1.bf16.xpose.msra.mxu0 0
        %969 = vmatprep.subr.bf16.mxu0 0
        %970 = vmatpush1.bf16.xpose.msra.mxu0 0
        %971 = vmatprep.mubr.bf16.mxu0 0
        %972 = vmatmul.mubr.bf16.gmra.mrb[0].mxu0 %v937
        %v973 = vpop.f32.mrb[0].mxu0
        %v974 = vadd.f32 0.0, %v973
        %v975 = vpop.f32.mrb[0].mxu0
        %v976 = vpop.f32.mrb[0].mxu0
        %v977 = vpop.f32.mrb[0].mxu0
        %978 = vdwg.mxu0
        %v979 = vmul.f32 %v974, 0.25
        %v980 = vadd.f32 %v979, %v819
        %v981 = vsel %vm612, %v980, -inf
        %982 = vmax.xlane.f32.xlu0 %v981
        %v983 = vpop.xlane.xlu0 %982
        %v984 = vsub.f32 %v980, %v983
        %v985 = vmul.f32 %v984, 1.442695
        %v986 = vpow.pop %v985
        %v987 = vsel %vm612, %v986, 0.0
        %988 = vadd.xlane.f32.xlu0 %v987
        %v989 = vpop.xlane.xlu0 %988
        %v990 = vrcp.pop %v989
        %v991 = vmul.f32 %v986, %v990
        %v992 = vpack.c.bf16 %v991, %v991
        %v994 = vsel %vm612, %v992, 0
        %996 = vmatprep.subr.bf16.mxu0 0
        %997 = vmatpush1.bf16.msra.mxu0 %v891
        %998 = vmatprep.subr.bf16.mxu0 0
        %999 = vmatpush1.bf16.msra.mxu0 0
        %1000 = vmatprep.subr.bf16.mxu0 0
        %1001 = vmatpush1.bf16.msra.mxu0 0
        %1002 = vmatprep.subr.bf16.mxu0 0
        %1003 = vmatpush1.bf16.msra.mxu0 0
        %1004 = vmatprep.subr.bf16.mxu0 0
        %1005 = vmatpush1.bf16.msra.mxu0 0
        %1006 = vmatprep.subr.bf16.mxu0 0
        %1007 = vmatpush1.bf16.msra.mxu0 0
        %1008 = vmatprep.subr.bf16.mxu0 0
        %1009 = vmatpush1.bf16.msra.mxu0 0
        %1010 = vmatprep.subr.bf16.mxu0 0
        %1011 = vmatpush1.bf16.msra.mxu0 0
        %1012 = vmatprep.subr.bf16.mxu0 0
        %1013 = vmatpush1.bf16.msra.mxu0 0
        %1014 = vmatprep.subr.bf16.mxu0 0
        %1015 = vmatpush1.bf16.msra.mxu0 0
        %1016 = vmatprep.subr.bf16.mxu0 0
        %1017 = vmatpush1.bf16.msra.mxu0 0
        %1018 = vmatprep.subr.bf16.mxu0 0
        %1019 = vmatpush1.bf16.msra.mxu0 0
        %1020 = vmatprep.subr.bf16.mxu0 0
        %1021 = vmatpush1.bf16.msra.mxu0 0
        %1022 = vmatprep.subr.bf16.mxu0 0
        %1023 = vmatpush1.bf16.msra.mxu0 0
        %1024 = vmatprep.subr.bf16.mxu0 0
        %1025 = vmatpush1.bf16.msra.mxu0 0
        %1026 = vmatprep.subr.bf16.mxu0 0
        %1027 = vmatpush1.bf16.msra.mxu0 0
        %1028 = vmatprep.mubr.bf16.mxu0 0
        %1029 = vmatmul.mubr.bf16.gmra.mrb[0].mxu0 %v994
        %v1030 = vpop.f32.mrb[0].mxu0
        %v1031 = vadd.f32 0.0, %v1030
        %v1032 = vpop.f32.mrb[0].mxu0
        %v1033 = vpop.f32.mrb[0].mxu0
        %v1034 = vpop.f32.mrb[0].mxu0
        %1035 = vdwg.mxu0
        %1036 = vrot.lane.b32.xlu0 %v820, 96
        %v1037 = vpop.permute.xlu0 %1036
        %1039 = vrot.lane.b32.xlu0 %v821, 112
        %v1040 = vpop.permute.xlu0 %1039
        %v1042 = vsel %vm725, %v1037, 0
        %v1045 = vsel %vm725, %v1040, 0
        %1047 = vmatprep.subr.bf16.mxu0 0
        %1048 = vmatpush1.bf16.xpose.msra.mxu0 %v1045
        %1049 = vmatprep.subr.bf16.mxu0 0
        %1050 = vmatpush1.bf16.xpose.msra.mxu0 0
        %1051 = vmatprep.subr.bf16.mxu0 0
        %1052 = vmatpush1.bf16.xpose.msra.mxu0 0
        %1053 = vmatprep.subr.bf16.mxu0 0
        %1054 = vmatpush1.bf16.xpose.msra.mxu0 0
        %1055 = vmatprep.subr.bf16.mxu0 0
        %1056 = vmatpush1.bf16.xpose.msra.mxu0 0
        %1057 = vmatprep.subr.bf16.mxu0 0
        %1058 = vmatpush1.bf16.xpose.msra.mxu0 0
        %1059 = vmatprep.subr.bf16.mxu0 0
        %1060 = vmatpush1.bf16.xpose.msra.mxu0 0
        %1061 = vmatprep.subr.bf16.mxu0 0
        %1062 = vmatpush1.bf16.xpose.msra.mxu0 0
        %1063 = vmatprep.subr.bf16.mxu0 0
        %1064 = vmatpush1.bf16.xpose.msra.mxu0 0
        %1065 = vmatprep.subr.bf16.mxu0 0
        %1066 = vmatpush1.bf16.xpose.msra.mxu0 0
        %1067 = vmatprep.subr.bf16.mxu0 0
        %1068 = vmatpush1.bf16.xpose.msra.mxu0 0
        %1069 = vmatprep.subr.bf16.mxu0 0
        %1070 = vmatpush1.bf16.xpose.msra.mxu0 0
        %1071 = vmatprep.subr.bf16.mxu0 0
        %1072 = vmatpush1.bf16.xpose.msra.mxu0 0
        %1073 = vmatprep.subr.bf16.mxu0 0
        %1074 = vmatpush1.bf16.xpose.msra.mxu0 0
        %1075 = vmatprep.subr.bf16.mxu0 0
        %1076 = vmatpush1.bf16.xpose.msra.mxu0 0
        %1077 = vmatprep.subr.bf16.mxu0 0
        %1078 = vmatpush1.bf16.xpose.msra.mxu0 0
        %1079 = vmatprep.mubr.bf16.mxu0 0
        %1080 = vmatmul.mubr.bf16.gmra.mrb[0].mxu0 %v1042
        %v1081 = vpop.f32.mrb[0].mxu0
        %v1082 = vadd.f32 0.0, %v1081
        %v1083 = vpop.f32.mrb[0].mxu0
        %v1084 = vpop.f32.mrb[0].mxu0
        %v1085 = vpop.f32.mrb[0].mxu0
        %1086 = vdwg.mxu0
        %v1087 = vmul.f32 %v1082, 0.25
        %v1088 = vadd.f32 %v1087, %v819
        %v1089 = vsel %vm612, %v1088, -inf
        %1090 = vmax.xlane.f32.xlu0 %v1089
        %v1091 = vpop.xlane.xlu0 %1090
        %v1092 = vsub.f32 %v1088, %v1091
        %v1093 = vmul.f32 %v1092, 1.442695
        %v1094 = vpow.pop %v1093
        %v1095 = vsel %vm612, %v1094, 0.0
        %1096 = vadd.xlane.f32.xlu0 %v1095
        %v1097 = vpop.xlane.xlu0 %1096
        %v1098 = vrcp.pop %v1097
        %v1099 = vmul.f32 %v1094, %v1098
        %v1100 = vpack.c.bf16 %v1099, %v1099
        %1101 = vrot.lane.b32.xlu0 %v882, 16
        %v1102 = vpop.permute.xlu0 %1101
        %v1104 = vsel %vm612, %v1100, 0
        %v1107 = vsel %vm889, %v1102, 0
        %1109 = vmatprep.subr.bf16.mxu0 0
        %1110 = vmatpush1.bf16.msra.mxu0 %v1107
        %1111 = vmatprep.subr.bf16.mxu0 0
        %1112 = vmatpush1.bf16.msra.mxu0 0
        %1113 = vmatprep.subr.bf16.mxu0 0
        %1114 = vmatpush1.bf16.msra.mxu0 0
        %1115 = vmatprep.subr.bf16.mxu0 0
        %1116 = vmatpush1.bf16.msra.mxu0 0
        %1117 = vmatprep.subr.bf16.mxu0 0
        %1118 = vmatpush1.bf16.msra.mxu0 0
        %1119 = vmatprep.subr.bf16.mxu0 0
        %1120 = vmatpush1.bf16.msra.mxu0 0
        %1121 = vmatprep.subr.bf16.mxu0 0
        %1122 = vmatpush1.bf16.msra.mxu0 0
        %1123 = vmatprep.subr.bf16.mxu0 0
        %1124 = vmatpush1.bf16.msra.mxu0 0
        %1125 = vmatprep.subr.bf16.mxu0 0
        %1126 = vmatpush1.bf16.msra.mxu0 0
        %1127 = vmatprep.subr.bf16.mxu0 0
        %1128 = vmatpush1.bf16.msra.mxu0 0
        %1129 = vmatprep.subr.bf16.mxu0 0
        %1130 = vmatpush1.bf16.msra.mxu0 0
        %1131 = vmatprep.subr.bf16.mxu0 0
        %1132 = vmatpush1.bf16.msra.mxu0 0
        %1133 = vmatprep.subr.bf16.mxu0 0
        %1134 = vmatpush1.bf16.msra.mxu0 0
        %1135 = vmatprep.subr.bf16.mxu0 0
        %1136 = vmatpush1.bf16.msra.mxu0 0
        %1137 = vmatprep.subr.bf16.mxu0 0
        %1138 = vmatpush1.bf16.msra.mxu0 0
        %1139 = vmatprep.subr.bf16.mxu0 0
        %1140 = vmatpush1.bf16.msra.mxu0 0
        %1141 = vmatprep.mubr.bf16.mxu0 0
        %1142 = vmatmul.mubr.bf16.gmra.mrb[0].mxu0 %v1104
        %v1143 = vpop.f32.mrb[0].mxu0
        %v1144 = vadd.f32 0.0, %v1143
        %v1145 = vpop.f32.mrb[0].mxu0
        %v1146 = vpop.f32.mrb[0].mxu0
        %v1147 = vpop.f32.mrb[0].mxu0
        %1148 = vdwg.mxu0
        %1149 = vrot.lane.b32.xlu0 %v820, 80
        %v1150 = vpop.permute.xlu0 %1149
        %v1152 = vsel %vm725, %v1150, 0
        %1154 = vmatprep.subr.bf16.mxu0 0
        %1155 = vmatpush1.bf16.xpose.msra.mxu0 %v1045
        %1156 = vmatprep.subr.bf16.mxu0 0
        %1157 = vmatpush1.bf16.xpose.msra.mxu0 0
        %1158 = vmatprep.subr.bf16.mxu0 0
        %1159 = vmatpush1.bf16.xpose.msra.mxu0 0
        %1160 = vmatprep.subr.bf16.mxu0 0
        %1161 = vmatpush1.bf16.xpose.msra.mxu0 0
        %1162 = vmatprep.subr.bf16.mxu0 0
        %1163 = vmatpush1.bf16.xpose.msra.mxu0 0
        %1164 = vmatprep.subr.bf16.mxu0 0
        %1165 = vmatpush1.bf16.xpose.msra.mxu0 0
        %1166 = vmatprep.subr.bf16.mxu0 0
        %1167 = vmatpush1.bf16.xpose.msra.mxu0 0
        %1168 = vmatprep.subr.bf16.mxu0 0
        %1169 = vmatpush1.bf16.xpose.msra.mxu0 0
        %1170 = vmatprep.subr.bf16.mxu0 0
        %1171 = vmatpush1.bf16.xpose.msra.mxu0 0
        %1172 = vmatprep.subr.bf16.mxu0 0
        %1173 = vmatpush1.bf16.xpose.msra.mxu0 0
        %1174 = vmatprep.subr.bf16.mxu0 0
        %1175 = vmatpush1.bf16.xpose.msra.mxu0 0
        %1176 = vmatprep.subr.bf16.mxu0 0
        %1177 = vmatpush1.bf16.xpose.msra.mxu0 0
        %1178 = vmatprep.subr.bf16.mxu0 0
        %1179 = vmatpush1.bf16.xpose.msra.mxu0 0
        %1180 = vmatprep.subr.bf16.mxu0 0
        %1181 = vmatpush1.bf16.xpose.msra.mxu0 0
        %1182 = vmatprep.subr.bf16.mxu0 0
        %1183 = vmatpush1.bf16.xpose.msra.mxu0 0
        %1184 = vmatprep.subr.bf16.mxu0 0
        %1185 = vmatpush1.bf16.xpose.msra.mxu0 0
        %1186 = vmatprep.mubr.bf16.mxu0 0
        %1187 = vmatmul.mubr.bf16.gmra.mrb[0].mxu0 %v1152
        %v1188 = vpop.f32.mrb[0].mxu0
        %v1189 = vadd.f32 0.0, %v1188
        %v1190 = vpop.f32.mrb[0].mxu0
        %v1191 = vpop.f32.mrb[0].mxu0
        %v1192 = vpop.f32.mrb[0].mxu0
        %1193 = vdwg.mxu0
        %v1194 = vmul.f32 %v1189, 0.25
        %v1195 = vadd.f32 %v1194, %v819
        %v1196 = vsel %vm612, %v1195, -inf
        %1197 = vmax.xlane.f32.xlu0 %v1196
        %v1198 = vpop.xlane.xlu0 %1197
        %v1199 = vsub.f32 %v1195, %v1198
        %v1200 = vmul.f32 %v1199, 1.442695
        %v1201 = vpow.pop %v1200
        %v1202 = vsel %vm612, %v1201, 0.0
        %1203 = vadd.xlane.f32.xlu0 %v1202
        %v1204 = vpop.xlane.xlu0 %1203
        %v1205 = vrcp.pop %v1204
        %v1206 = vmul.f32 %v1201, %v1205
        %v1207 = vpack.c.bf16 %v1206, %v1206
        %v1209 = vsel %vm612, %v1207, 0
        %1211 = vmatprep.subr.bf16.mxu0 0
        %1212 = vmatpush1.bf16.msra.mxu0 %v1107
        %1213 = vmatprep.subr.bf16.mxu0 0
        %1214 = vmatpush1.bf16.msra.mxu0 0
        %1215 = vmatprep.subr.bf16.mxu0 0
        %1216 = vmatpush1.bf16.msra.mxu0 0
        %1217 = vmatprep.subr.bf16.mxu0 0
        %1218 = vmatpush1.bf16.msra.mxu0 0
        %1219 = vmatprep.subr.bf16.mxu0 0
        %1220 = vmatpush1.bf16.msra.mxu0 0
        %1221 = vmatprep.subr.bf16.mxu0 0
        %1222 = vmatpush1.bf16.msra.mxu0 0
        %1223 = vmatprep.subr.bf16.mxu0 0
        %1224 = vmatpush1.bf16.msra.mxu0 0
        %1225 = vmatprep.subr.bf16.mxu0 0
        %1226 = vmatpush1.bf16.msra.mxu0 0
        %1227 = vmatprep.subr.bf16.mxu0 0
        %1228 = vmatpush1.bf16.msra.mxu0 0
        %1229 = vmatprep.subr.bf16.mxu0 0
        %1230 = vmatpush1.bf16.msra.mxu0 0
        %1231 = vmatprep.subr.bf16.mxu0 0
        %1232 = vmatpush1.bf16.msra.mxu0 0
        %1233 = vmatprep.subr.bf16.mxu0 0
        %1234 = vmatpush1.bf16.msra.mxu0 0
        %1235 = vmatprep.subr.bf16.mxu0 0
        %1236 = vmatpush1.bf16.msra.mxu0 0
        %1237 = vmatprep.subr.bf16.mxu0 0
        %1238 = vmatpush1.bf16.msra.mxu0 0
        %1239 = vmatprep.subr.bf16.mxu0 0
        %1240 = vmatpush1.bf16.msra.mxu0 0
        %1241 = vmatprep.subr.bf16.mxu0 0
        %1242 = vmatpush1.bf16.msra.mxu0 0
        %1243 = vmatprep.mubr.bf16.mxu0 0
        %1244 = vmatmul.mubr.bf16.gmra.mrb[0].mxu0 %v1209
        %v1245 = vpop.f32.mrb[0].mxu0
        %v1246 = vadd.f32 0.0, %v1245
        %v1247 = vpop.f32.mrb[0].mxu0
        %v1248 = vpop.f32.mrb[0].mxu0
        %v1249 = vpop.f32.mrb[0].mxu0
        %1250 = vdwg.mxu0
        %1252 = vrot.lane.b32.xlu0 %v1031, 16
        %v1253 = vpop.permute.xlu0 %1252
        %1256 = vrot.lane.b32.xlu0 %v1144, 32
        %v1257 = vpop.permute.xlu0 %1256
        %1260 = vrot.lane.b32.xlu0 %v1246, 48
        %v1261 = vpop.permute.xlu0 %1260
        %v1263 = vsel %vm725, %v928, %v1253
        %v1264 = vsel %vm509, %v1263, %v1257
        %v1265 = vsel %vm730, %v1264, %v1261
        %s1266 = scalar_lea.vmem %s3, 8
        %v1267 = vld [vmem:[%s1266] sm:$0xff]
        %v1268 = vpack.c.bf16 %v732, %v732
        %v1269 = vpack.c.bf16 %v818, %v818
        %v1271 = vsel %vm725, %v1268, 0
        %v1274 = vsel %vm725, %v1269, 0
        %1276 = vmatprep.subr.bf16.mxu0 0
        %1277 = vmatpush1.bf16.xpose.msra.mxu0 %v1274
        %1278 = vmatprep.subr.bf16.mxu0 0
        %1279 = vmatpush1.bf16.xpose.msra.mxu0 0
        %1280 = vmatprep.subr.bf16.mxu0 0
        %1281 = vmatpush1.bf16.xpose.msra.mxu0 0
        %1282 = vmatprep.subr.bf16.mxu0 0
        %1283 = vmatpush1.bf16.xpose.msra.mxu0 0
        %1284 = vmatprep.subr.bf16.mxu0 0
        %1285 = vmatpush1.bf16.xpose.msra.mxu0 0
        %1286 = vmatprep.subr.bf16.mxu0 0
        %1287 = vmatpush1.bf16.xpose.msra.mxu0 0
        %1288 = vmatprep.subr.bf16.mxu0 0
        %1289 = vmatpush1.bf16.xpose.msra.mxu0 0
        %1290 = vmatprep.subr.bf16.mxu0 0
        %1291 = vmatpush1.bf16.xpose.msra.mxu0 0
        %1292 = vmatprep.subr.bf16.mxu0 0
        %1293 = vmatpush1.bf16.xpose.msra.mxu0 0
        %1294 = vmatprep.subr.bf16.mxu0 0
        %1295 = vmatpush1.bf16.xpose.msra.mxu0 0
        %1296 = vmatprep.subr.bf16.mxu0 0
        %1297 = vmatpush1.bf16.xpose.msra.mxu0 0
        %1298 = vmatprep.subr.bf16.mxu0 0
        %1299 = vmatpush1.bf16.xpose.msra.mxu0 0
        %1300 = vmatprep.subr.bf16.mxu0 0
        %1301 = vmatpush1.bf16.xpose.msra.mxu0 0
        %1302 = vmatprep.subr.bf16.mxu0 0
        %1303 = vmatpush1.bf16.xpose.msra.mxu0 0
        %1304 = vmatprep.subr.bf16.mxu0 0
        %1305 = vmatpush1.bf16.xpose.msra.mxu0 0
        %1306 = vmatprep.subr.bf16.mxu0 0
        %1307 = vmatpush1.bf16.xpose.msra.mxu0 0
        %1308 = vmatprep.mubr.bf16.mxu0 0
        %1309 = vmatmul.mubr.bf16.gmra.mrb[0].mxu0 %v1271
        %v1310 = vpop.f32.mrb[0].mxu0
        %v1311 = vadd.f32 0.0, %v1310
        %v1312 = vpop.f32.mrb[0].mxu0
        %v1313 = vpop.f32.mrb[0].mxu0
        %v1314 = vpop.f32.mrb[0].mxu0
        %1315 = vdwg.mxu0
        %v1316 = vmul.f32 %v1311, 0.25
        %v1317 = vadd.f32 %v1316, %v1267
        %v1318 = vsel %vm612, %v1317, -inf
        %1319 = vmax.xlane.f32.xlu0 %v1318
        %v1320 = vpop.xlane.xlu0 %1319
        %v1321 = vsub.f32 %v1317, %v1320
        %v1322 = vmul.f32 %v1321, 1.442695
        %v1323 = vpow.pop %v1322
        %v1324 = vsel %vm612, %v1323, 0.0
        %1325 = vadd.xlane.f32.xlu0 %v1324
        %v1326 = vpop.xlane.xlu0 %1325
        %v1327 = vrcp.pop %v1326
        %v1328 = vmul.f32 %v1323, %v1327
        %v1329 = vpack.c.bf16 %v1328, %v1328
        %v1330 = vpack.c.bf16 %v591, %v591
        %1332 = vrot.lane.b32.xlu0 %v1330, 32
        %v1333 = vpop.permute.xlu0 %1332
        %v1335 = vsel %vm612, %v1329, 0
        %v1338 = vsel %vm889, %v1333, 0
        %1340 = vmatprep.subr.bf16.mxu0 0
        %1341 = vmatpush1.bf16.msra.mxu0 %v1338
        %1342 = vmatprep.subr.bf16.mxu0 0
        %1343 = vmatpush1.bf16.msra.mxu0 0
        %1344 = vmatprep.subr.bf16.mxu0 0
        %1345 = vmatpush1.bf16.msra.mxu0 0
        %1346 = vmatprep.subr.bf16.mxu0 0
        %1347 = vmatpush1.bf16.msra.mxu0 0
        %1348 = vmatprep.subr.bf16.mxu0 0
        %1349 = vmatpush1.bf16.msra.mxu0 0
        %1350 = vmatprep.subr.bf16.mxu0 0
        %1351 = vmatpush1.bf16.msra.mxu0 0
        %1352 = vmatprep.subr.bf16.mxu0 0
        %1353 = vmatpush1.bf16.msra.mxu0 0
        %1354 = vmatprep.subr.bf16.mxu0 0
        %1355 = vmatpush1.bf16.msra.mxu0 0
        %1356 = vmatprep.subr.bf16.mxu0 0
        %1357 = vmatpush1.bf16.msra.mxu0 0
        %1358 = vmatprep.subr.bf16.mxu0 0
        %1359 = vmatpush1.bf16.msra.mxu0 0
        %1360 = vmatprep.subr.bf16.mxu0 0
        %1361 = vmatpush1.bf16.msra.mxu0 0
        %1362 = vmatprep.subr.bf16.mxu0 0
        %1363 = vmatpush1.bf16.msra.mxu0 0
        %1364 = vmatprep.subr.bf16.mxu0 0
        %1365 = vmatpush1.bf16.msra.mxu0 0
        %1366 = vmatprep.subr.bf16.mxu0 0
        %1367 = vmatpush1.bf16.msra.mxu0 0
        %1368 = vmatprep.subr.bf16.mxu0 0
        %1369 = vmatpush1.bf16.msra.mxu0 0
        %1370 = vmatprep.subr.bf16.mxu0 0
        %1371 = vmatpush1.bf16.msra.mxu0 0
        %1372 = vmatprep.mubr.bf16.mxu0 0
        %1373 = vmatmul.mubr.bf16.gmra.mrb[0].mxu0 %v1335
        %v1374 = vpop.f32.mrb[0].mxu0
        %v1375 = vadd.f32 0.0, %v1374
        %v1376 = vpop.f32.mrb[0].mxu0
        %v1377 = vpop.f32.mrb[0].mxu0
        %v1378 = vpop.f32.mrb[0].mxu0
        %1379 = vdwg.mxu0
        %1381 = vrot.lane.b32.xlu0 %v1268, 112
        %v1382 = vpop.permute.xlu0 %1381
        %v1384 = vsel %vm725, %v1382, 0
        %1386 = vmatprep.subr.bf16.mxu0 0
        %1387 = vmatpush1.bf16.xpose.msra.mxu0 %v1274
        %1388 = vmatprep.subr.bf16.mxu0 0
        %1389 = vmatpush1.bf16.xpose.msra.mxu0 0
        %1390 = vmatprep.subr.bf16.mxu0 0
        %1391 = vmatpush1.bf16.xpose.msra.mxu0 0
        %1392 = vmatprep.subr.bf16.mxu0 0
        %1393 = vmatpush1.bf16.xpose.msra.mxu0 0
        %1394 = vmatprep.subr.bf16.mxu0 0
        %1395 = vmatpush1.bf16.xpose.msra.mxu0 0
        %1396 = vmatprep.subr.bf16.mxu0 0
        %1397 = vmatpush1.bf16.xpose.msra.mxu0 0
        %1398 = vmatprep.subr.bf16.mxu0 0
        %1399 = vmatpush1.bf16.xpose.msra.mxu0 0
        %1400 = vmatprep.subr.bf16.mxu0 0
        %1401 = vmatpush1.bf16.xpose.msra.mxu0 0
        %1402 = vmatprep.subr.bf16.mxu0 0
        %1403 = vmatpush1.bf16.xpose.msra.mxu0 0
        %1404 = vmatprep.subr.bf16.mxu0 0
        %1405 = vmatpush1.bf16.xpose.msra.mxu0 0
        %1406 = vmatprep.subr.bf16.mxu0 0
        %1407 = vmatpush1.bf16.xpose.msra.mxu0 0
        %1408 = vmatprep.subr.bf16.mxu0 0
        %1409 = vmatpush1.bf16.xpose.msra.mxu0 0
        %1410 = vmatprep.subr.bf16.mxu0 0
        %1411 = vmatpush1.bf16.xpose.msra.mxu0 0
        %1412 = vmatprep.subr.bf16.mxu0 0
        %1413 = vmatpush1.bf16.xpose.msra.mxu0 0
        %1414 = vmatprep.subr.bf16.mxu0 0
        %1415 = vmatpush1.bf16.xpose.msra.mxu0 0
        %1416 = vmatprep.subr.bf16.mxu0 0
        %1417 = vmatpush1.bf16.xpose.msra.mxu0 0
        %1418 = vmatprep.mubr.bf16.mxu0 0
        %1419 = vmatmul.mubr.bf16.gmra.mrb[0].mxu0 %v1384
        %v1420 = vpop.f32.mrb[0].mxu0
        %v1421 = vadd.f32 0.0, %v1420
        %v1422 = vpop.f32.mrb[0].mxu0
        %v1423 = vpop.f32.mrb[0].mxu0
        %v1424 = vpop.f32.mrb[0].mxu0
        %1425 = vdwg.mxu0
        %v1426 = vmul.f32 %v1421, 0.25
        %v1427 = vadd.f32 %v1426, %v1267
        %v1428 = vsel %vm612, %v1427, -inf
        %1429 = vmax.xlane.f32.xlu0 %v1428
        %v1430 = vpop.xlane.xlu0 %1429
        %v1431 = vsub.f32 %v1427, %v1430
        %v1432 = vmul.f32 %v1431, 1.442695
        %v1433 = vpow.pop %v1432
        %v1434 = vsel %vm612, %v1433, 0.0
        %1435 = vadd.xlane.f32.xlu0 %v1434
        %v1436 = vpop.xlane.xlu0 %1435
        %v1437 = vrcp.pop %v1436
        %v1438 = vmul.f32 %v1433, %v1437
        %v1439 = vpack.c.bf16 %v1438, %v1438
        %v1441 = vsel %vm612, %v1439, 0
        %1443 = vmatprep.subr.bf16.mxu0 0
        %1444 = vmatpush1.bf16.msra.mxu0 %v1338
        %1445 = vmatprep.subr.bf16.mxu0 0
        %1446 = vmatpush1.bf16.msra.mxu0 0
        %1447 = vmatprep.subr.bf16.mxu0 0
        %1448 = vmatpush1.bf16.msra.mxu0 0
        %1449 = vmatprep.subr.bf16.mxu0 0
        %1450 = vmatpush1.bf16.msra.mxu0 0
        %1451 = vmatprep.subr.bf16.mxu0 0
        %1452 = vmatpush1.bf16.msra.mxu0 0
        %1453 = vmatprep.subr.bf16.mxu0 0
        %1454 = vmatpush1.bf16.msra.mxu0 0
        %1455 = vmatprep.subr.bf16.mxu0 0
        %1456 = vmatpush1.bf16.msra.mxu0 0
        %1457 = vmatprep.subr.bf16.mxu0 0
        %1458 = vmatpush1.bf16.msra.mxu0 0
        %1459 = vmatprep.subr.bf16.mxu0 0
        %1460 = vmatpush1.bf16.msra.mxu0 0
        %1461 = vmatprep.subr.bf16.mxu0 0
        %1462 = vmatpush1.bf16.msra.mxu0 0
        %1463 = vmatprep.subr.bf16.mxu0 0
        %1464 = vmatpush1.bf16.msra.mxu0 0
        %1465 = vmatprep.subr.bf16.mxu0 0
        %1466 = vmatpush1.bf16.msra.mxu0 0
        %1467 = vmatprep.subr.bf16.mxu0 0
        %1468 = vmatpush1.bf16.msra.mxu0 0
        %1469 = vmatprep.subr.bf16.mxu0 0
        %1470 = vmatpush1.bf16.msra.mxu0 0
        %1471 = vmatprep.subr.bf16.mxu0 0
        %1472 = vmatpush1.bf16.msra.mxu0 0
        %1473 = vmatprep.subr.bf16.mxu0 0
        %1474 = vmatpush1.bf16.msra.mxu0 0
        %1475 = vmatprep.mubr.bf16.mxu0 0
        %1476 = vmatmul.mubr.bf16.gmra.mrb[0].mxu0 %v1441
        %v1477 = vpop.f32.mrb[0].mxu0
        %v1478 = vadd.f32 0.0, %v1477
        %v1479 = vpop.f32.mrb[0].mxu0
        %v1480 = vpop.f32.mrb[0].mxu0
        %v1481 = vpop.f32.mrb[0].mxu0
        %1482 = vdwg.mxu0
        %1483 = vrot.lane.b32.xlu0 %v1268, 96
        %v1484 = vpop.permute.xlu0 %1483
        %1486 = vrot.lane.b32.xlu0 %v1269, 112
        %v1487 = vpop.permute.xlu0 %1486
        %v1489 = vsel %vm725, %v1484, 0
        %v1492 = vsel %vm725, %v1487, 0
        %1494 = vmatprep.subr.bf16.mxu0 0
        %1495 = vmatpush1.bf16.xpose.msra.mxu0 %v1492
        %1496 = vmatprep.subr.bf16.mxu0 0
        %1497 = vmatpush1.bf16.xpose.msra.mxu0 0
        %1498 = vmatprep.subr.bf16.mxu0 0
        %1499 = vmatpush1.bf16.xpose.msra.mxu0 0
        %1500 = vmatprep.subr.bf16.mxu0 0
        %1501 = vmatpush1.bf16.xpose.msra.mxu0 0
        %1502 = vmatprep.subr.bf16.mxu0 0
        %1503 = vmatpush1.bf16.xpose.msra.mxu0 0
        %1504 = vmatprep.subr.bf16.mxu0 0
        %1505 = vmatpush1.bf16.xpose.msra.mxu0 0
        %1506 = vmatprep.subr.bf16.mxu0 0
        %1507 = vmatpush1.bf16.xpose.msra.mxu0 0
        %1508 = vmatprep.subr.bf16.mxu0 0
        %1509 = vmatpush1.bf16.xpose.msra.mxu0 0
        %1510 = vmatprep.subr.bf16.mxu0 0
        %1511 = vmatpush1.bf16.xpose.msra.mxu0 0
        %1512 = vmatprep.subr.bf16.mxu0 0
        %1513 = vmatpush1.bf16.xpose.msra.mxu0 0
        %1514 = vmatprep.subr.bf16.mxu0 0
        %1515 = vmatpush1.bf16.xpose.msra.mxu0 0
        %1516 = vmatprep.subr.bf16.mxu0 0
        %1517 = vmatpush1.bf16.xpose.msra.mxu0 0
        %1518 = vmatprep.subr.bf16.mxu0 0
        %1519 = vmatpush1.bf16.xpose.msra.mxu0 0
        %1520 = vmatprep.subr.bf16.mxu0 0
        %1521 = vmatpush1.bf16.xpose.msra.mxu0 0
        %1522 = vmatprep.subr.bf16.mxu0 0
        %1523 = vmatpush1.bf16.xpose.msra.mxu0 0
        %1524 = vmatprep.subr.bf16.mxu0 0
        %1525 = vmatpush1.bf16.xpose.msra.mxu0 0
        %1526 = vmatprep.mubr.bf16.mxu0 0
        %1527 = vmatmul.mubr.bf16.gmra.mrb[0].mxu0 %v1489
        %v1528 = vpop.f32.mrb[0].mxu0
        %v1529 = vadd.f32 0.0, %v1528
        %v1530 = vpop.f32.mrb[0].mxu0
        %v1531 = vpop.f32.mrb[0].mxu0
        %v1532 = vpop.f32.mrb[0].mxu0
        %1533 = vdwg.mxu0
        %v1534 = vmul.f32 %v1529, 0.25
        %v1535 = vadd.f32 %v1534, %v1267
        %v1536 = vsel %vm612, %v1535, -inf
        %1537 = vmax.xlane.f32.xlu0 %v1536
        %v1538 = vpop.xlane.xlu0 %1537
        %v1539 = vsub.f32 %v1535, %v1538
        %v1540 = vmul.f32 %v1539, 1.442695
        %v1541 = vpow.pop %v1540
        %v1542 = vsel %vm612, %v1541, 0.0
        %1543 = vadd.xlane.f32.xlu0 %v1542
        %v1544 = vpop.xlane.xlu0 %1543
        %v1545 = vrcp.pop %v1544
        %v1546 = vmul.f32 %v1541, %v1545
        %v1547 = vpack.c.bf16 %v1546, %v1546
        %1548 = vrot.lane.b32.xlu0 %v1330, 16
        %v1549 = vpop.permute.xlu0 %1548
        %v1551 = vsel %vm612, %v1547, 0
        %v1554 = vsel %vm889, %v1549, 0
        %1556 = vmatprep.subr.bf16.mxu0 0
        %1557 = vmatpush1.bf16.msra.mxu0 %v1554
        %1558 = vmatprep.subr.bf16.mxu0 0
        %1559 = vmatpush1.bf16.msra.mxu0 0
        %1560 = vmatprep.subr.bf16.mxu0 0
        %1561 = vmatpush1.bf16.msra.mxu0 0
        %1562 = vmatprep.subr.bf16.mxu0 0
        %1563 = vmatpush1.bf16.msra.mxu0 0
        %1564 = vmatprep.subr.bf16.mxu0 0
        %1565 = vmatpush1.bf16.msra.mxu0 0
        %1566 = vmatprep.subr.bf16.mxu0 0
        %1567 = vmatpush1.bf16.msra.mxu0 0
        %1568 = vmatprep.subr.bf16.mxu0 0
        %1569 = vmatpush1.bf16.msra.mxu0 0
        %1570 = vmatprep.subr.bf16.mxu0 0
        %1571 = vmatpush1.bf16.msra.mxu0 0
        %1572 = vmatprep.subr.bf16.mxu0 0
        %1573 = vmatpush1.bf16.msra.mxu0 0
        %1574 = vmatprep.subr.bf16.mxu0 0
        %1575 = vmatpush1.bf16.msra.mxu0 0
        %1576 = vmatprep.subr.bf16.mxu0 0
        %1577 = vmatpush1.bf16.msra.mxu0 0
        %1578 = vmatprep.subr.bf16.mxu0 0
        %1579 = vmatpush1.bf16.msra.mxu0 0
        %1580 = vmatprep.subr.bf16.mxu0 0
        %1581 = vmatpush1.bf16.msra.mxu0 0
        %1582 = vmatprep.subr.bf16.mxu0 0
        %1583 = vmatpush1.bf16.msra.mxu0 0
        %1584 = vmatprep.subr.bf16.mxu0 0
        %1585 = vmatpush1.bf16.msra.mxu0 0
        %1586 = vmatprep.subr.bf16.mxu0 0
        %1587 = vmatpush1.bf16.msra.mxu0 0
        %1588 = vmatprep.mubr.bf16.mxu0 0
        %1589 = vmatmul.mubr.bf16.gmra.mrb[0].mxu0 %v1551
        %v1590 = vpop.f32.mrb[0].mxu0
        %v1591 = vadd.f32 0.0, %v1590
        %v1592 = vpop.f32.mrb[0].mxu0
        %v1593 = vpop.f32.mrb[0].mxu0
        %v1594 = vpop.f32.mrb[0].mxu0
        %1595 = vdwg.mxu0
        %1596 = vrot.lane.b32.xlu0 %v1268, 80
        %v1597 = vpop.permute.xlu0 %1596
        %v1599 = vsel %vm725, %v1597, 0
        %1601 = vmatprep.subr.bf16.mxu0 0
        %1602 = vmatpush1.bf16.xpose.msra.mxu0 %v1492
        %1603 = vmatprep.subr.bf16.mxu0 0
        %1604 = vmatpush1.bf16.xpose.msra.mxu0 0
        %1605 = vmatprep.subr.bf16.mxu0 0
        %1606 = vmatpush1.bf16.xpose.msra.mxu0 0
        %1607 = vmatprep.subr.bf16.mxu0 0
        %1608 = vmatpush1.bf16.xpose.msra.mxu0 0
        %1609 = vmatprep.subr.bf16.mxu0 0
        %1610 = vmatpush1.bf16.xpose.msra.mxu0 0
        %1611 = vmatprep.subr.bf16.mxu0 0
        %1612 = vmatpush1.bf16.xpose.msra.mxu0 0
        %1613 = vmatprep.subr.bf16.mxu0 0
        %1614 = vmatpush1.bf16.xpose.msra.mxu0 0
        %1615 = vmatprep.subr.bf16.mxu0 0
        %1616 = vmatpush1.bf16.xpose.msra.mxu0 0
        %1617 = vmatprep.subr.bf16.mxu0 0
        %1618 = vmatpush1.bf16.xpose.msra.mxu0 0
        %1619 = vmatprep.subr.bf16.mxu0 0
        %1620 = vmatpush1.bf16.xpose.msra.mxu0 0
        %1621 = vmatprep.subr.bf16.mxu0 0
        %1622 = vmatpush1.bf16.xpose.msra.mxu0 0
        %1623 = vmatprep.subr.bf16.mxu0 0
        %1624 = vmatpush1.bf16.xpose.msra.mxu0 0
        %1625 = vmatprep.subr.bf16.mxu0 0
        %1626 = vmatpush1.bf16.xpose.msra.mxu0 0
        %1627 = vmatprep.subr.bf16.mxu0 0
        %1628 = vmatpush1.bf16.xpose.msra.mxu0 0
        %1629 = vmatprep.subr.bf16.mxu0 0
        %1630 = vmatpush1.bf16.xpose.msra.mxu0 0
        %1631 = vmatprep.subr.bf16.mxu0 0
        %1632 = vmatpush1.bf16.xpose.msra.mxu0 0
        %1633 = vmatprep.mubr.bf16.mxu0 0
        %1634 = vmatmul.mubr.bf16.gmra.mrb[0].mxu0 %v1599
        %v1635 = vpop.f32.mrb[0].mxu0
        %v1636 = vadd.f32 0.0, %v1635
        %v1637 = vpop.f32.mrb[0].mxu0
        %v1638 = vpop.f32.mrb[0].mxu0
        %v1639 = vpop.f32.mrb[0].mxu0
        %1640 = vdwg.mxu0
        %v1641 = vmul.f32 %v1636, 0.25
        %v1642 = vadd.f32 %v1641, %v1267
        %v1643 = vsel %vm612, %v1642, -inf
        %1644 = vmax.xlane.f32.xlu0 %v1643
        %v1645 = vpop.xlane.xlu0 %1644
        %v1646 = vsub.f32 %v1642, %v1645
        %v1647 = vmul.f32 %v1646, 1.442695
        %v1648 = vpow.pop %v1647
        %v1649 = vsel %vm612, %v1648, 0.0
        %1650 = vadd.xlane.f32.xlu0 %v1649
        %v1651 = vpop.xlane.xlu0 %1650
        %v1652 = vrcp.pop %v1651
        %v1653 = vmul.f32 %v1648, %v1652
        %v1654 = vpack.c.bf16 %v1653, %v1653
        %v1656 = vsel %vm612, %v1654, 0
        %1658 = vmatprep.subr.bf16.mxu0 0
        %1659 = vmatpush1.bf16.msra.mxu0 %v1554
        %1660 = vmatprep.subr.bf16.mxu0 0
        %1661 = vmatpush1.bf16.msra.mxu0 0
        %1662 = vmatprep.subr.bf16.mxu0 0
        %1663 = vmatpush1.bf16.msra.mxu0 0
        %1664 = vmatprep.subr.bf16.mxu0 0
        %1665 = vmatpush1.bf16.msra.mxu0 0
        %1666 = vmatprep.subr.bf16.mxu0 0
        %1667 = vmatpush1.bf16.msra.mxu0 0
        %1668 = vmatprep.subr.bf16.mxu0 0
        %1669 = vmatpush1.bf16.msra.mxu0 0
        %1670 = vmatprep.subr.bf16.mxu0 0
        %1671 = vmatpush1.bf16.msra.mxu0 0
        %1672 = vmatprep.subr.bf16.mxu0 0
        %1673 = vmatpush1.bf16.msra.mxu0 0
        %1674 = vmatprep.subr.bf16.mxu0 0
        %1675 = vmatpush1.bf16.msra.mxu0 0
        %1676 = vmatprep.subr.bf16.mxu0 0
        %1677 = vmatpush1.bf16.msra.mxu0 0
        %1678 = vmatprep.subr.bf16.mxu0 0
        %1679 = vmatpush1.bf16.msra.mxu0 0
        %1680 = vmatprep.subr.bf16.mxu0 0
        %1681 = vmatpush1.bf16.msra.mxu0 0
        %1682 = vmatprep.subr.bf16.mxu0 0
        %1683 = vmatpush1.bf16.msra.mxu0 0
        %1684 = vmatprep.subr.bf16.mxu0 0
        %1685 = vmatpush1.bf16.msra.mxu0 0
        %1686 = vmatprep.subr.bf16.mxu0 0
        %1687 = vmatpush1.bf16.msra.mxu0 0
        %1688 = vmatprep.subr.bf16.mxu0 0
        %1689 = vmatpush1.bf16.msra.mxu0 0
        %1690 = vmatprep.mubr.bf16.mxu0 0
        %1691 = vmatmul.mubr.bf16.gmra.mrb[0].mxu0 %v1656
        %v1692 = vpop.f32.mrb[0].mxu0
        %v1693 = vadd.f32 0.0, %v1692
        %v1694 = vpop.f32.mrb[0].mxu0
        %v1695 = vpop.f32.mrb[0].mxu0
        %v1696 = vpop.f32.mrb[0].mxu0
        %1697 = vdwg.mxu0
        %1699 = vrot.lane.b32.xlu0 %v1478, 16
        %v1700 = vpop.permute.xlu0 %1699
        %1703 = vrot.lane.b32.xlu0 %v1591, 32
        %v1704 = vpop.permute.xlu0 %1703
        %1707 = vrot.lane.b32.xlu0 %v1693, 48
        %v1708 = vpop.permute.xlu0 %1707
        %v1710 = vsel %vm725, %v1375, %v1700
        %v1711 = vsel %vm509, %v1710, %v1704
        %v1712 = vsel %vm730, %v1711, %v1708
        %v1713 = vpack.c.bf16 %v1712, %v1265
        %v1714 = vld [vmem:[%s474] sm:$0xf]
        %v1715 = vld [vmem:[%s474 + $0x4] sm:$0xf]
        %v1716 = vld [vmem:[%s474 + $0x8] sm:$0xf]
        %v1717 = vld [vmem:[%s474 + $0xc] sm:$0xf]
        %v1718 = vld [vmem:[%s474 + $0x10] sm:$0xf]
        %v1719 = vld [vmem:[%s474 + $0x14] sm:$0xf]
        %v1720 = vld [vmem:[%s474 + $0x18] sm:$0xf]
        %v1721 = vld [vmem:[%s474 + $0x1c] sm:$0xf]
        %v1730 = vunpack.c.l.b16 %v1714
        %v1731 = vunpack.c.l.b16 %v1715
        %v1732 = vunpack.c.l.b16 %v1716
        %v1733 = vunpack.c.l.b16 %v1717
        %v1734 = vunpack.c.l.b16 %v1718
        %v1735 = vunpack.c.l.b16 %v1719
        %v1736 = vunpack.c.l.b16 %v1720
        %v1737 = vunpack.c.l.b16 %v1721
        %v1738 = vpack.c.b16 %v1731, %v1730
        %v1739 = vpack.c.b16 %v1733, %v1732
        %v1740 = vpack.c.b16 %v1735, %v1734
        %v1741 = vpack.c.b16 %v1737, %v1736
        %vm1746 = vcmask 523264
        %v1748 = vsel %vm1746, %v1713, 0
        %1750 = vmatprep.subr.bf16.mxu0 0
        %1751 = vmatpush1.bf16.msra.mxu0 %v1738
        %1752 = vmatprep.subr.bf16.mxu0 0
        %1753 = vmatpush1.bf16.msra.mxu0 %v1739
        %1754 = vmatprep.subr.bf16.mxu0 0
        %1755 = vmatpush1.bf16.msra.mxu0 %v1740
        %1756 = vmatprep.subr.bf16.mxu0 0
        %1757 = vmatpush1.bf16.msra.mxu0 %v1741
        %1758 = vmatprep.subr.bf16.mxu0 0
        %1759 = vmatpush1.bf16.msra.mxu0 0
        %1760 = vmatprep.subr.bf16.mxu0 0
        %1761 = vmatpush1.bf16.msra.mxu0 0
        %1762 = vmatprep.subr.bf16.mxu0 0
        %1763 = vmatpush1.bf16.msra.mxu0 0
        %1764 = vmatprep.subr.bf16.mxu0 0
        %1765 = vmatpush1.bf16.msra.mxu0 0
        %1766 = vmatprep.subr.bf16.mxu0 0
        %1767 = vmatpush1.bf16.msra.mxu0 0
        %1768 = vmatprep.subr.bf16.mxu0 0
        %1769 = vmatpush1.bf16.msra.mxu0 0
        %1770 = vmatprep.subr.bf16.mxu0 0
        %1771 = vmatpush1.bf16.msra.mxu0 0
        %1772 = vmatprep.subr.bf16.mxu0 0
        %1773 = vmatpush1.bf16.msra.mxu0 0
        %1774 = vmatprep.subr.bf16.mxu0 0
        %1775 = vmatpush1.bf16.msra.mxu0 0
        %1776 = vmatprep.subr.bf16.mxu0 0
        %1777 = vmatpush1.bf16.msra.mxu0 0
        %1778 = vmatprep.subr.bf16.mxu0 0
        %1779 = vmatpush1.bf16.msra.mxu0 0
        %1780 = vmatprep.subr.bf16.mxu0 0
        %1781 = vmatpush1.bf16.msra.mxu0 0
        %1782 = vmatprep.mubr.bf16.mxu0 0
        %1783 = vmatmul.mubr.bf16.gmra.mrb[0].mxu0 %v1748
        %v1784 = vpop.f32.mrb[0].mxu0
        %v1785 = vadd.f32 0.0, %v1784
        %v1786 = vpop.f32.mrb[0].mxu0
        %v1787 = vpop.f32.mrb[0].mxu0
        %v1788 = vadd.f32 0.0, %v1787
        %v1789 = vpop.f32.mrb[0].mxu0
        %1790 = vdwg.mxu0
        %v1791 = vadd.f32 %v500, %v1785
        %v1792 = vadd.f32 %v501, %v1788
        %v1793 = vld [vmem:[%s477] sm:$0x1]
        %v1794 = vmul.f32 %v1791, %v1791
        %v1795 = vmul.f32 %v1792, %v1792
        %v1796 = vsel %vm509, %v1794, 0.0
        %1797 = vadd.xlane.f32.xlu0 %v1796
        %v1798 = vpop.xlane.xlu0 %1797
        %v1799 = vsel %vm509, %v1795, 0.0
        %1800 = vadd.xlane.f32.xlu0 %v1799
        %v1801 = vpop.xlane.xlu0 %1800
        %v1802 = vmul.f32 %v1798, %v516
        %v1803 = vmul.f32 %v1801, %v516
        %v1804 = vadd.f32 %v1802, 1e-06
        %v1805 = vadd.f32 %v1803, 1e-06
        %v1806 = vrsqrt.pop %v1804
        %v1807 = vrsqrt.pop %v1805
        %v1808 = vmul.f32 %v1791, %v1806
        %v1809 = vmul.f32 %v1792, %v1807
        %v1811 = vlaneseq
        %v1812 = vshrl.u32 %v1811, 7
        %v1813 = vsub.s32 0, %v1812
        %v1814 = vrot.slane %v1793, %v1813
        %v1816 = vmul.f32 %v1808, %v1814
        %v1817 = vmul.f32 %v1809, %v1814
        %v1818 = vpack.c.bf16 %v1817, %v1816
        %v1819 = vld [vmem:[%s482] sm:$0xf]
        %v1820 = vld [vmem:[%s482 + $0x4] sm:$0xf]
        %v1821 = vld [vmem:[%s482 + $0x8] sm:$0xf]
        %v1822 = vld [vmem:[%s482 + $0xc] sm:$0xf]
        %v1827 = vunpack.c.l.b16 %v1819
        %v1828 = vunpack.c.l.b16 %v1820
        %v1829 = vunpack.c.l.b16 %v1821
        %v1830 = vunpack.c.l.b16 %v1822
        %v1831 = vpack.c.b16 %v1828, %v1827
        %v1832 = vpack.c.b16 %v1830, %v1829
        %v1836 = vsel %vm509, %v1818, 0
        %1838 = vmatprep.subr.bf16.mxu0 0
        %1839 = vmatpush1.bf16.msra.mxu0 %v1831
        %1840 = vmatprep.subr.bf16.mxu0 0
        %1841 = vmatpush1.bf16.msra.mxu0 %v1832
        %1842 = vmatprep.subr.bf16.mxu0 0
        %1843 = vmatpush1.bf16.msra.mxu0 0
        %1844 = vmatprep.subr.bf16.mxu0 0
        %1845 = vmatpush1.bf16.msra.mxu0 0
        %1846 = vmatprep.subr.bf16.mxu0 0
        %1847 = vmatpush1.bf16.msra.mxu0 0
        %1848 = vmatprep.subr.bf16.mxu0 0
        %1849 = vmatpush1.bf16.msra.mxu0 0
        %1850 = vmatprep.subr.bf16.mxu0 0
        %1851 = vmatpush1.bf16.msra.mxu0 0
        %1852 = vmatprep.subr.bf16.mxu0 0
        %1853 = vmatpush1.bf16.msra.mxu0 0
        %1854 = vmatprep.subr.bf16.mxu0 0
        %1855 = vmatpush1.bf16.msra.mxu0 0
        %1856 = vmatprep.subr.bf16.mxu0 0
        %1857 = vmatpush1.bf16.msra.mxu0 0
        %1858 = vmatprep.subr.bf16.mxu0 0
        %1859 = vmatpush1.bf16.msra.mxu0 0
        %1860 = vmatprep.subr.bf16.mxu0 0
        %1861 = vmatpush1.bf16.msra.mxu0 0
        %1862 = vmatprep.subr.bf16.mxu0 0
        %1863 = vmatpush1.bf16.msra.mxu0 0
        %1864 = vmatprep.subr.bf16.mxu0 0
        %1865 = vmatpush1.bf16.msra.mxu0 0
        %1866 = vmatprep.subr.bf16.mxu0 0
        %1867 = vmatpush1.bf16.msra.mxu0 0
        %1868 = vmatprep.subr.bf16.mxu0 0
        %1869 = vmatpush1.bf16.msra.mxu0 0
        %1870 = vmatprep.mubr.bf16.mxu0 0
        %1871 = vmatmul.mubr.bf16.gmra.mrb[0].mxu0 %v1836
        %v1872 = vpop.f32.mrb[0].mxu0
        %v1873 = vadd.f32 0.0, %v1872
        %v1874 = vpop.f32.mrb[0].mxu0
        %v1875 = vpop.f32.mrb[0].mxu0
        %v1876 = vadd.f32 0.0, %v1875
        %v1877 = vpop.f32.mrb[0].mxu0
        %1878 = vdwg.mxu0
        %v1879 = vmul.f32 %v1873, 0.5
        %v1880 = vmul.f32 %v1876, 0.5
        %v1881 = vmul.f32 %v1873, 0.044715
        %v1882 = vmul.f32 %v1876, 0.044715
        %v1883 = vmul.f32 %v1881, %v1873
        %v1884 = vmul.f32 %v1882, %v1876
        %v1885 = vmul.f32 %v1883, %v1873
        %v1886 = vmul.f32 %v1884, %v1876
        %v1887 = vadd.f32 %v1873, %v1885
        %v1888 = vadd.f32 %v1876, %v1886
        %v1889 = vmul.f32 %v1887, 0.7978846
        %v1890 = vmul.f32 %v1888, 0.7978846
        %v1891 = vtanh.pop %v1889
        %v1892 = vtanh.pop %v1890
        %v1893 = vadd.f32 %v1891, 1.0
        %v1894 = vadd.f32 %v1892, 1.0
        %v1895 = vmul.f32 %v1879, %v1893
        %v1896 = vmul.f32 %v1880, %v1894
        %1899 = vrot.lane.b32.xlu0 %v1873, 64
        %v1900 = vpop.permute.xlu0 %1899
        %1901 = vrot.lane.b32.xlu0 %v1876, 64
        %v1902 = vpop.permute.xlu0 %1901
        %v1905 = vmul.f32 %v1895, %v1900
        %v1906 = vmul.f32 %v1896, %v1902
        %v1907 = vpack.c.bf16 %v1906, %v1905
        %v1908 = vld [vmem:[%s487] sm:$0xf]
        %v1909 = vld [vmem:[%s487 + $0x4] sm:$0xf]
        %v1910 = vld [vmem:[%s487 + $0x8] sm:$0xf]
        %v1911 = vld [vmem:[%s487 + $0xc] sm:$0xf]
        %v1912 = vld [vmem:[%s487 + $0x10] sm:$0xf]
        %v1913 = vld [vmem:[%s487 + $0x14] sm:$0xf]
        %v1914 = vld [vmem:[%s487 + $0x18] sm:$0xf]
        %v1915 = vld [vmem:[%s487 + $0x1c] sm:$0xf]
        %v1924 = vunpack.c.l.b16 %v1908
        %v1925 = vunpack.c.l.b16 %v1909
        %v1926 = vunpack.c.l.b16 %v1910
        %v1927 = vunpack.c.l.b16 %v1911
        %v1928 = vunpack.c.l.b16 %v1912
        %v1929 = vunpack.c.l.b16 %v1913
        %v1930 = vunpack.c.l.b16 %v1914
        %v1931 = vunpack.c.l.b16 %v1915
        %v1932 = vpack.c.b16 %v1925, %v1924
        %v1933 = vpack.c.b16 %v1927, %v1926
        %v1934 = vpack.c.b16 %v1929, %v1928
        %v1935 = vpack.c.b16 %v1931, %v1930
        %v1941 = vsel %vm1746, %v1907, 0
        %1943 = vmatprep.subr.bf16.mxu0 0
        %1944 = vmatpush1.bf16.msra.mxu0 %v1932
        %1945 = vmatprep.subr.bf16.mxu0 0
        %1946 = vmatpush1.bf16.msra.mxu0 %v1933
        %1947 = vmatprep.subr.bf16.mxu0 0
        %1948 = vmatpush1.bf16.msra.mxu0 %v1934
        %1949 = vmatprep.subr.bf16.mxu0 0
        %1950 = vmatpush1.bf16.msra.mxu0 %v1935
        %1951 = vmatprep.subr.bf16.mxu0 0
        %1952 = vmatpush1.bf16.msra.mxu0 0
        %1953 = vmatprep.subr.bf16.mxu0 0
        %1954 = vmatpush1.bf16.msra.mxu0 0
        %1955 = vmatprep.subr.bf16.mxu0 0
        %1956 = vmatpush1.bf16.msra.mxu0 0
        %1957 = vmatprep.subr.bf16.mxu0 0
        %1958 = vmatpush1.bf16.msra.mxu0 0
        %1959 = vmatprep.subr.bf16.mxu0 0
        %1960 = vmatpush1.bf16.msra.mxu0 0
        %1961 = vmatprep.subr.bf16.mxu0 0
        %1962 = vmatpush1.bf16.msra.mxu0 0
        %1963 = vmatprep.subr.bf16.mxu0 0
        %1964 = vmatpush1.bf16.msra.mxu0 0
        %1965 = vmatprep.subr.bf16.mxu0 0
        %1966 = vmatpush1.bf16.msra.mxu0 0
        %1967 = vmatprep.subr.bf16.mxu0 0
        %1968 = vmatpush1.bf16.msra.mxu0 0
        %1969 = vmatprep.subr.bf16.mxu0 0
        %1970 = vmatpush1.bf16.msra.mxu0 0
        %1971 = vmatprep.subr.bf16.mxu0 0
        %1972 = vmatpush1.bf16.msra.mxu0 0
        %1973 = vmatprep.subr.bf16.mxu0 0
        %1974 = vmatpush1.bf16.msra.mxu0 0
        %1975 = vmatprep.mubr.bf16.mxu0 0
        %1976 = vmatmul.mubr.bf16.gmra.mrb[0].mxu0 %v1941
        %v1977 = vpop.f32.mrb[0].mxu0
        %v1978 = vadd.f32 0.0, %v1977
        %v1979 = vpop.f32.mrb[0].mxu0
        %v1980 = vpop.f32.mrb[0].mxu0
        %v1981 = vadd.f32 0.0, %v1980
        %v1982 = vpop.f32.mrb[0].mxu0
        %1983 = vdwg.mxu0
        %v1984 = vadd.f32 %v1791, %v1978
        %v1985 = vadd.f32 %v1792, %v1981
        %1986 = vst.msk [vmem:[#allocation2] sm:$0xff] %vm509, %v1984
        %1987 = vst.msk [vmem:[#allocation2 + $0x8] sm:$0xff] %vm509, %v1985
        %p1988 = scmp.eq.s32.totalorder %s24, 1
        // Predicated region
        $region73: #{tpu_custom_call.1} parent=67 // pred_check
          %p1989 = pneg %p1988
        $region74: #{tpu_custom_call.1} parent=67 // pred_check_branch
          %1991 = sbr.rel (%p1989) target = $region76
        $region75: #{tpu_custom_call.1} parent=67 // pred_region
          %v1992 = vld [vmem:[%s10] sm:$0x1]
          %v1993 = vmul.f32 %v1984, %v1984
          %v1994 = vmul.f32 %v1985, %v1985
          %v1995 = vsel %vm509, %v1993, 0.0
          %1996 = vadd.xlane.f32.xlu0 %v1995
          %v1997 = vpop.xlane.xlu0 %1996
          %v1998 = vsel %vm509, %v1994, 0.0
          %1999 = vadd.xlane.f32.xlu0 %v1998
          %v2000 = vpop.xlane.xlu0 %1999
          %v2001 = vmul.f32 %v1997, %v516
          %v2002 = vmul.f32 %v2000, %v516
          %v2003 = vadd.f32 %v2001, 1e-06
          %v2004 = vadd.f32 %v2002, 1e-06
          %v2005 = vrsqrt.pop %v2003
          %v2006 = vrsqrt.pop %v2004
          %v2007 = vmul.f32 %v1984, %v2005
          %v2008 = vmul.f32 %v1985, %v2006
          %v2010 = vlaneseq
          %v2011 = vshrl.u32 %v2010, 7
          %v2012 = vsub.s32 0, %v2011
          %v2013 = vrot.slane %v1992, %v2012
          %v2015 = vmul.f32 %v2007, %v2013
          %v2016 = vmul.f32 %v2008, %v2013
          %v2017 = vpack.c.bf16 %v2016, %v2015
          %v2018 = vld [vmem:[%s11] sm:$0xff]
          %v2019 = vld [vmem:[%s11 + $0x8] sm:$0xff]
          %v2020 = vld [vmem:[%s11 + $0x10] sm:$0xff]
          %v2021 = vld [vmem:[%s11 + $0x18] sm:$0xff]
          %v2026 = vunpack.c.l.b16 %v2018
          %v2027 = vunpack.c.h.b16 %v2018
          %v2028 = vunpack.c.l.b16 %v2019
          %v2029 = vunpack.c.h.b16 %v2019
          %v2030 = vunpack.c.l.b16 %v2020
          %v2031 = vunpack.c.h.b16 %v2020
          %v2032 = vunpack.c.l.b16 %v2021
          %v2033 = vunpack.c.h.b16 %v2021
          %v2034 = vpack.c.b16 %v2028, %v2026
          %v2035 = vpack.c.b16 %v2029, %v2027
          %v2036 = vpack.c.b16 %v2032, %v2030
          %v2037 = vpack.c.b16 %v2033, %v2031
          %v2043 = vsel %vm509, %v2017, 0
          %2045 = vmatprep.subr.bf16.mxu0 %v2035
          %2046 = vmatpush1.bf16.msra.mxu0 %v2034
          %2047 = vmatprep.subr.bf16.mxu0 %v2037
          %2048 = vmatpush1.bf16.msra.mxu0 %v2036
          %2049 = vmatprep.subr.bf16.mxu0 0
          %2050 = vmatpush1.bf16.msra.mxu0 0
          %2051 = vmatprep.subr.bf16.mxu0 0
          %2052 = vmatpush1.bf16.msra.mxu0 0
          %2053 = vmatprep.subr.bf16.mxu0 0
          %2054 = vmatpush1.bf16.msra.mxu0 0
          %2055 = vmatprep.subr.bf16.mxu0 0
          %2056 = vmatpush1.bf16.msra.mxu0 0
          %2057 = vmatprep.subr.bf16.mxu0 0
          %2058 = vmatpush1.bf16.msra.mxu0 0
          %2059 = vmatprep.subr.bf16.mxu0 0
          %2060 = vmatpush1.bf16.msra.mxu0 0
          %2061 = vmatprep.subr.bf16.mxu0 0
          %2062 = vmatpush1.bf16.msra.mxu0 0
          %2063 = vmatprep.subr.bf16.mxu0 0
          %2064 = vmatpush1.bf16.msra.mxu0 0
          %2065 = vmatprep.subr.bf16.mxu0 0
          %2066 = vmatpush1.bf16.msra.mxu0 0
          %2067 = vmatprep.subr.bf16.mxu0 0
          %2068 = vmatpush1.bf16.msra.mxu0 0
          %2069 = vmatprep.subr.bf16.mxu0 0
          %2070 = vmatpush1.bf16.msra.mxu0 0
          %2071 = vmatprep.subr.bf16.mxu0 0
          %2072 = vmatpush1.bf16.msra.mxu0 0
          %2073 = vmatprep.subr.bf16.mxu0 0
          %2074 = vmatpush1.bf16.msra.mxu0 0
          %2075 = vmatprep.subr.bf16.mxu0 0
          %2076 = vmatpush1.bf16.msra.mxu0 0
          %2077 = vmatprep.mubr.bf16.mxu0 0
          %2078 = vmatmul.mubr.bf16.gmra.mrb[0].mxu0 %v2043
          %v2079 = vpop.f32.mrb[0].mxu0
          %v2080 = vadd.f32 0.0, %v2079
          %v2081 = vpop.f32.mrb[0].mxu0
          %v2082 = vadd.f32 0.0, %v2081
          %v2083 = vpop.f32.mrb[0].mxu0
          %v2084 = vadd.f32 0.0, %v2083
          %v2085 = vpop.f32.mrb[0].mxu0
          %v2086 = vadd.f32 0.0, %v2085
          %2087 = vdwg.mxu0
          %2088 = vst [vmem:[#allocation3] sm:$0xff] %v2080
          %2089 = vst [vmem:[#allocation3 + $0x8] sm:$0xff] %v2082
          %2090 = vst [vmem:[#allocation3 + $0x10] sm:$0xff] %v2084
          %2091 = vst [vmem:[#allocation3 + $0x18] sm:$0xff] %v2086
        $region76: #{tpu_custom_call.1} parent=67 // pred_fallthru
          _
        // Predicated region
        $region77: #{tpu_custom_call.1} parent=67 // pred_check
          %p2092 = pneg %p319
        $region78: #{tpu_custom_call.1} parent=67 // pred_check_branch
          %2094 = sbr.rel (%p2092) target = $region80
        $region79: #{tpu_custom_call.1} parent=67 // pred_region
          %s2096 = ssub.s32 512, 512
          %2097 = vsyncadd [#allocation4], %s2096
          %s2098 = sshll.u32 [#allocation3], 4
          %s2099 = int_to_ptr.vmem [resolvable:$true] %s2098
          %2104 = dma.vmem_to_hbm [thread:$0]  %s2099, 512, %s12, [#allocation4], 256, 256, 16
        $region80: #{tpu_custom_call.1} parent=67 // pred_fallthru
          _
        // Predicated region
        $region81: #{tpu_custom_call.1} parent=67 // pred_check
          %p2105 = pneg %p319
        $region82: #{tpu_custom_call.1} parent=67 // pred_check_branch
          %2107 = sbr.rel (%p2105) target = $region84
        $region83: #{tpu_custom_call.1} parent=67 // pred_region
          %2108 = dma.done [#allocation4], 512
        $region84: #{tpu_custom_call.1} parent=67 // pred_fallthru
          _
      $region68: #{tpu_custom_call.1} parent=5 // pred_fallthru
        _
      %p2109 = scmp.le.s32.totalorder 2, %s19
      // Predicated region
      $region85: #{tpu_custom_call.1} parent=5 // pred_check
        %p2110 = pneg %p2109
      $region86: #{tpu_custom_call.1} parent=5 // pred_check_branch
        %2112 = sbr.rel (%p2110) target = $region88
      $region87: #{tpu_custom_call.1} parent=5 // pred_region
        %s2113 = ssub.s32 %s19, 2
      $region88: #{tpu_custom_call.1} parent=5 // pred_fallthru
        _
    $region6: #{tpu_custom_call.1} parent=1 // loop_footer
      %s23 = sadd.s32 1, %s19
    $region7: #{tpu_custom_call.1} parent=1 // loop_footer_branch
      %18 = sbr.rel target = $region3
    $region8: #{tpu_custom_call.1} parent=1 // loop_exit
      _
    %2114 = vsyncpa [#allocation4], 1
    %s2115 = scalar_lea.sflag [#allocation4], 1
    %2116 = vsyncpa %s2115, 1

</llo_original>
